<compile_context>
chip_gen: v6e
topology: v6e:2x2x1
jax: 0.10.0
libtpu: 0.0.40
codegen_flags: <defaults>
</compile_context>

<pallas_src>
import functools
import math

import jax
import jax.numpy as jnp
from jax.experimental import pallas as pl
from jax.experimental.pallas import tpu as pltpu

BN_EPS = 1e-5


def _round_up(x, m):
    return (x + m - 1) // m * m


def _pad2(x, rows, cols):
    r, c = x.shape
    return jnp.pad(x, ((0, rows - r), (0, cols - c)))


# ---------------------------------------------------------------------------
# Pass 1: tiled aggregation  y = ReLU( inv_deg * (A @ hWn) + (h @ Ws + b) )
# ---------------------------------------------------------------------------
def _aggregate_kernel(adj_ref, hwn_ref, hws_ref, y_ref, acc_ref, deg_ref):
    k = pl.program_id(1)

    @pl.when(k == 0)
    def _():
        acc_ref[...] = jnp.zeros_like(acc_ref)
        deg_ref[...] = jnp.zeros_like(deg_ref)

    adj = adj_ref[...]                                        # [TM, TK] bf16 (0/1)
    acc_ref[...] += jnp.dot(adj, hwn_ref[...],
                            preferred_element_type=jnp.float32)
    # fused in-degree accumulation (row sums of the same adj tile; XLU slot)
    deg_ref[...] += jnp.sum(adj.astype(jnp.float32), axis=1, keepdims=True)

    @pl.when(k == pl.num_programs(1) - 1)
    def _():
        deg = deg_ref[...]                                    # [TM, 1]
        inv_deg = jnp.where(deg > 0.5, 1.0 / jnp.maximum(deg, 1.0), 0.0)
        y = acc_ref[...] * inv_deg + hws_ref[...]             # bias already in hws
        y_ref[...] = jnp.maximum(y, 0.0)                      # ReLU activation


# ---------------------------------------------------------------------------
# Pass 2: tiled elementwise BatchNorm apply + residual
# ---------------------------------------------------------------------------
def _bn_residual_kernel(residual, y_ref, h_ref, mean_ref, var_ref,
                        gamma_ref, beta_ref, out_ref):
    inv_std = jax.lax.rsqrt(var_ref[...] + BN_EPS)            # EUP, ~free
    out = (y_ref[...] - mean_ref[...]) * inv_std * gamma_ref[...] + beta_ref[...]
    if residual:                                              # static flag
        out = out + h_ref[...]
    out_ref[...] = out.astype(out_ref.dtype)


# ---------------------------------------------------------------------------
# Wrapper
# ---------------------------------------------------------------------------
def graphsage_layer(adj, h, w_self, w_neigh, bias, gamma, beta,
                    *, residual=True, tm=256, tk=512):
    """adj: [N, N] raw 0/1 adjacency (dst x src); h: [N, F_in]."""
    n, f_in = h.shape
    f_out = w_self.shape[1]
    residual = bool(residual) and (f_in == f_out)   # module disables residual on mismatch

    f_pad = _round_up(f_out, 128)                   # lane-dense feature dim
    n_pad = _round_up(n, math.lcm(tm, tk))

    # Small [N,F] projections done once (reassociation: (A h) Wn == A (h Wn)).
    h32 = h.astype(jnp.float32)
    hws = h32 @ w_self.astype(jnp.float32) + bias.astype(jnp.float32)[None, :]
    hwn = h32 @ w_neigh.astype(jnp.float32)

    adj_p = _pad2(adj, n_pad, n_pad).astype(jnp.bfloat16)     # MXU bf16, exact 0/1
    hwn_p = _pad2(hwn, n_pad, f_pad).astype(jnp.bfloat16)
    hws_p = _pad2(hws, n_pad, f_pad)                          # f32 (carries bias)

    grid = (n_pad // tm, n_pad // tk)
    y_pad = pl.pallas_call(
        _aggregate_kernel,
        out_shape=jax.ShapeDtypeStruct((n_pad, f_pad), jnp.float32),
        grid_spec=pltpu.PrefetchScalarGridSpec(
            num_scalar_prefetch=0,
            grid=grid,
            in_specs=[
                pl.BlockSpec((tm, tk), lambda i, k: (i, k)),      # adj tile
                pl.BlockSpec((tk, f_pad), lambda i, k: (k, 0)),   # hWn tile
                pl.BlockSpec((tm, f_pad), lambda i, k: (i, 0)),   # hWs row tile
            ],
            out_specs=pl.BlockSpec((tm, f_pad), lambda i, k: (i, 0)),
            scratch_shapes=[
                pltpu.VMEM((tm, f_pad), jnp.float32),             # accumulator
                pltpu.VMEM((tm, 1), jnp.float32),                 # degree accumulator
            ],
        ),
        compiler_params=pltpu.CompilerParams(
            dimension_semantics=("parallel", "arbitrary"),
            vmem_limit_bytes=48 * 1024 * 1024,
        ),
    )(adj_p, hwn_p, hws_p)

    # Global batch statistics over the real N nodes (tiny [N,F] reduction in XLA).
    y_valid = y_pad[:n]
    mean = jnp.mean(y_valid, axis=0, keepdims=True)                       # [1, f_pad]
    var = jnp.mean(jnp.square(y_valid - mean), axis=0, keepdims=True)     # biased, as BN

    gamma_p = jnp.pad(gamma.astype(jnp.float32), (0, f_pad - f_out)).reshape(1, f_pad)
    beta_p = jnp.pad(beta.astype(jnp.float32), (0, f_pad - f_out)).reshape(1, f_pad)
    h_res_p = _pad2(h32, n_pad, f_pad) if residual else hws_p   # placeholder if unused

    out_pad = pl.pallas_call(
        functools.partial(_bn_residual_kernel, residual),
        out_shape=jax.ShapeDtypeStruct((n_pad, f_pad), jnp.float32),
        grid_spec=pltpu.PrefetchScalarGridSpec(
            num_scalar_prefetch=0,
            grid=(n_pad // tm,),
            in_specs=[
                pl.BlockSpec((tm, f_pad), lambda i: (i, 0)),   # y
                pl.BlockSpec((tm, f_pad), lambda i: (i, 0)),   # h (residual)
                pl.BlockSpec((1, f_pad), lambda i: (0, 0)),    # mean
                pl.BlockSpec((1, f_pad), lambda i: (0, 0)),    # var
                pl.BlockSpec((1, f_pad), lambda i: (0, 0)),    # gamma
                pl.BlockSpec((1, f_pad), lambda i: (0, 0)),    # beta
            ],
            out_specs=pl.BlockSpec((tm, f_pad), lambda i: (i, 0)),
        ),
        compiler_params=pltpu.CompilerParams(
            dimension_semantics=("parallel",),
        ),
    )(y_pad, h_res_p, mean, var, gamma_p, beta_p)

    return out_pad[:n, :f_out]


if __name__ == "__main__":
    # Small deterministic example: 600 nodes, in_feats = out_feats = 32
    N, F = 600, 32
    key = jax.random.PRNGKey(0)
    k_h, k_ws, k_wn, k_b, k_adj = jax.random.split(key, 5)

    h = jax.random.normal(k_h, (N, F), dtype=jnp.float32)

    scale = 1.0 / jnp.sqrt(jnp.float32(F))
    w_self = jax.random.uniform(k_ws, (F, F), minval=-scale, maxval=scale)
    w_neigh = jax.random.uniform(k_wn, (F, F), minval=-scale, maxval=scale)
    bias = jax.random.uniform(k_b, (F,), minval=-scale, maxval=scale)
    gamma = jnp.ones((F,), jnp.float32)     # BatchNorm1d weight
    beta = jnp.zeros((F,), jnp.float32)     # BatchNorm1d bias

    # Random graph: 0/1 adjacency (dst x src), no self loops
    adj = (jax.random.uniform(k_adj, (N, N)) > 0.6).astype(jnp.float32)
    adj = adj * (1.0 - jnp.eye(N, dtype=jnp.float32))

    out = graphsage_layer(adj, h, w_self, w_neigh, bias, gamma, beta)
    out = jax.block_until_ready(out)
    assert out.shape == (N, F)

    # Pure-JAX f32 reference (loose tolerance: adjacency path runs in bf16 on MXU)
    deg = jnp.sum(adj, axis=1, keepdims=True)
    h_neigh = jnp.where(deg > 0, jnp.dot(adj, h) / jnp.maximum(deg, 1.0), 0.0)
    y = jnp.maximum(jnp.dot(h, w_self) + jnp.dot(h_neigh, w_neigh) + bias, 0.0)
    mean = jnp.mean(y, axis=0, keepdims=True)
    var = jnp.mean(jnp.square(y - mean), axis=0, keepdims=True)
    ref = (y - mean) * jax.lax.rsqrt(var + BN_EPS) * gamma + beta + h
    err = float(jnp.max(jnp.abs(out - ref)))
    assert err < 5e-2, f"max abs err {err}"

    print("KERNEL_OK")
</pallas_src>

<mosaic_0001>
module attributes {stable_mosaic.version = 11 : i64} {
  func.func @_aggregate_kernel(%arg0: i32, %arg1: i32, %arg2: memref<256x512xbf16, #tpu.memory_space<vmem>>, %arg3: memref<512x128xbf16, #tpu.memory_space<vmem>>, %arg4: memref<256x128xf32, #tpu.memory_space<vmem>>, %arg5: memref<256x128xf32, #tpu.memory_space<vmem>>, %arg6: memref<256x128xf32, #tpu.memory_space<vmem>>, %arg7: memref<256x1xf32, #tpu.memory_space<vmem>>) attributes {dimension_semantics = [#tpu.dimension_semantics<parallel>, #tpu.dimension_semantics<arbitrary>], iteration_bounds = array<i64: 4, 2>, scalar_prefetch = 0 : i64, scratch_operands = 2 : i64, tpu.core_type = #tpu.core_type<tc>, window_params = [{transform_indices = @transform_0, window_bounds = array<i64: 256, 512>}, {transform_indices = @transform_1, window_bounds = array<i64: 512, 128>}, {transform_indices = @transform_2, window_bounds = array<i64: 256, 128>}, {transform_indices = @transform_3, window_bounds = array<i64: 256, 128>}]} {
    %c0_i32 = arith.constant 0 : i32
    %0 = arith.cmpi eq, %arg1, %c0_i32 : i32
    %1 = arith.extui %0 : i1 to i32
    %c0_i32_0 = arith.constant 0 : i32
    %2 = arith.cmpi ne, %1, %c0_i32_0 : i32
    scf.if %2 {
      %cst_14 = arith.constant 0.000000e+00 : f32
      %18 = vector.broadcast %cst_14 : f32 to vector<256x128xf32>
      %c0_15 = arith.constant 0 : index
      %c0_16 = arith.constant 0 : index
      %19 = vector.load %arg6[%c0_15, %c0_16] : memref<256x128xf32, #tpu.memory_space<vmem>>, vector<256x128xf32>
      tpu.vector_store %arg6[%c0_15, %c0_16], %18 {strides = array<i32>} : memref<256x128xf32, #tpu.memory_space<vmem>>, vector<256x128xf32>,
      %cst_17 = arith.constant 0.000000e+00 : f32
      %20 = vector.broadcast %cst_17 : f32 to vector<256x1xf32>
      %c0_18 = arith.constant 0 : index
      %c0_19 = arith.constant 0 : index
      %21 = vector.load %arg7[%c0_18, %c0_19] : memref<256x1xf32, #tpu.memory_space<vmem>>, vector<256x1xf32>
      tpu.vector_store %arg7[%c0_18, %c0_19], %20 {strides = array<i32>} : memref<256x1xf32, #tpu.memory_space<vmem>>, vector<256x1xf32>,
    } else {
    }
    %c0 = arith.constant 0 : index
    %c0_1 = arith.constant 0 : index
    %3 = vector.load %arg2[%c0, %c0_1] : memref<256x512xbf16, #tpu.memory_space<vmem>>, vector<256x512xbf16>
    %c0_2 = arith.constant 0 : index
    %c0_3 = arith.constant 0 : index
    %4 = vector.load %arg6[%c0_2, %c0_3] : memref<256x128xf32, #tpu.memory_space<vmem>>, vector<256x128xf32>
    %c0_4 = arith.constant 0 : index
    %c0_5 = arith.constant 0 : index
    %5 = vector.load %arg3[%c0_4, %c0_5] : memref<512x128xbf16, #tpu.memory_space<vmem>>, vector<512x128xbf16>
    %cst = arith.constant dense<0.000000e+00> : vector<256x128xf32>
    %6 = tpu.matmul %3, %5, %cst {dimension_numbers = #tpu.dot_dimension_numbers<[1], [0], [0], [1], [0, 0, 1, 1], [], []>} : vector<256x512xbf16>, vector<512x128xbf16>, vector<256x128xf32> -> vector<256x128xf32>
    %7 = arith.addf %4, %6 : vector<256x128xf32>
    %c0_6 = arith.constant 0 : index
    %c0_7 = arith.constant 0 : index
    %8 = vector.load %arg6[%c0_6, %c0_7] : memref<256x128xf32, #tpu.memory_space<vmem>>, vector<256x128xf32>
    tpu.vector_store %arg6[%c0_6, %c0_7], %7 {strides = array<i32>} : memref<256x128xf32, #tpu.memory_space<vmem>>, vector<256x128xf32>,
    %c0_8 = arith.constant 0 : index
    %c0_9 = arith.constant 0 : index
    %9 = vector.load %arg7[%c0_8, %c0_9] : memref<256x1xf32, #tpu.memory_space<vmem>>, vector<256x1xf32>
    %10 = arith.extf %3 : vector<256x512xbf16> to vector<256x512xf32>
    %cst_10 = arith.constant dense<0.000000e+00> : vector<256xf32>
    %11 = vector.multi_reduction <add>, %10, %cst_10 [1] : vector<256x512xf32> to vector<256xf32>
    %12 = vector.shape_cast %11 : vector<256xf32> to vector<256x1xf32>
    %13 = arith.addf %9, %12 : vector<256x1xf32>
    %c0_11 = arith.constant 0 : index
    %c0_12 = arith.constant 0 : index
    %14 = vector.load %arg7[%c0_11, %c0_12] : memref<256x1xf32, #tpu.memory_space<vmem>>, vector<256x1xf32>
    tpu.vector_store %arg7[%c0_11, %c0_12], %13 {strides = array<i32>} : memref<256x1xf32, #tpu.memory_space<vmem>>, vector<256x1xf32>,
    %c1_i32 = arith.constant 1 : i32
    %15 = arith.cmpi eq, %arg1, %c1_i32 : i32
    %16 = arith.extui %15 : i1 to i32
    %c0_i32_13 = arith.constant 0 : i32
    %17 = arith.cmpi ne, %16, %c0_i32_13 : i32
    scf.if %17 {
      %c0_14 = arith.constant 0 : index
      %c0_15 = arith.constant 0 : index
      %18 = vector.load %arg7[%c0_14, %c0_15] : memref<256x1xf32, #tpu.memory_space<vmem>>, vector<256x1xf32>
      %cst_16 = arith.constant 5.000000e-01 : f32
      %19 = vector.broadcast %cst_16 : f32 to vector<256x1xf32>
      %20 = arith.cmpf ogt, %18, %19 : vector<256x1xf32>
      %cst_17 = arith.constant 1.000000e+00 : f32
      %21 = vector.broadcast %cst_17 : f32 to vector<256x1xf32>
      %22 = arith.maximumf %18, %21 : vector<256x1xf32>
      %cst_18 = arith.constant 1.000000e+00 : f32
      %23 = vector.broadcast %cst_18 : f32 to vector<256x1xf32>
      %24 = arith.divf %23, %22 : vector<256x1xf32>
      %cst_19 = arith.constant 0.000000e+00 : f32
      %25 = vector.broadcast %cst_19 : f32 to vector<256x1xf32>
      %26 = arith.select %20, %24, %25 : vector<256x1xi1>, vector<256x1xf32>
      %c0_20 = arith.constant 0 : index
      %c0_21 = arith.constant 0 : index
      %27 = vector.load %arg6[%c0_20, %c0_21] : memref<256x128xf32, #tpu.memory_space<vmem>>, vector<256x128xf32>
      %28 = vector.broadcast %26 : vector<256x1xf32> to vector<256x128xf32>
      %29 = arith.mulf %27, %28 : vector<256x128xf32>
      %c0_22 = arith.constant 0 : index
      %c0_23 = arith.constant 0 : index
      %30 = vector.load %arg4[%c0_22, %c0_23] : memref<256x128xf32, #tpu.memory_space<vmem>>, vector<256x128xf32>
      %31 = arith.addf %29, %30 : vector<256x128xf32>
      %cst_24 = arith.constant 0.000000e+00 : f32
      %32 = vector.broadcast %cst_24 : f32 to vector<256x128xf32>
      %33 = arith.maximumf %31, %32 : vector<256x128xf32>
      %c0_25 = arith.constant 0 : index
      %c0_26 = arith.constant 0 : index
      %34 = vector.load %arg5[%c0_25, %c0_26] : memref<256x128xf32, #tpu.memory_space<vmem>>, vector<256x128xf32>
      tpu.vector_store %arg5[%c0_25, %c0_26], %33 {strides = array<i32>} : memref<256x128xf32, #tpu.memory_space<vmem>>, vector<256x128xf32>,
    } else {
    }
    return
  }
  func.func @transform_0(%arg0: i32, %arg1: i32) -> (i32, i32) {
    %c0_i32 = arith.constant 0 : i32
    return %arg0, %arg1 : i32, i32
  }
  func.func @transform_1(%arg0: i32, %arg1: i32) -> (i32, i32) {
    %c0_i32 = arith.constant 0 : i32
    %c0_i32_0 = arith.constant 0 : i32
    return %arg1, %c0_i32 : i32, i32
  }
  func.func @transform_2(%arg0: i32, %arg1: i32) -> (i32, i32) {
    %c0_i32 = arith.constant 0 : i32
    %c0_i32_0 = arith.constant 0 : i32
    return %arg0, %c0_i32 : i32, i32
  }
  func.func @transform_3(%arg0: i32, %arg1: i32) -> (i32, i32) {
    %c0_i32 = arith.constant 0 : i32
    %c0_i32_0 = arith.constant 0 : i32
    return %arg0, %c0_i32 : i32, i32
  }
}

</mosaic_0001>

<llo_original>
// kernel: tpu_custom_call.1
$region0: #{tpu_custom_call.1}
  #allocation0 [shape = 'u32[]', space=smem, size = 0x4, offset = 0x4, fixed_abs, tag = 'smem constant byte address 0x4 - core index']
  #allocation1 [shape = 'u32[144,128]{1,0:T(1,128)}', space=vmem, size = 0x12000, scoped, tag = 'internal scratch']
  #allocation2 [shape = 'f32[256,128]{1,0:T(8,128)}', space=vmem, size = 0x20000, scoped, tag = 'scratch operand']
  #allocation3 [shape = 'f32[256,1]{1,0:T(8,128)}', space=vmem, size = 0x20000, scoped, tag = 'scratch operand']
  %s0 = inlined_call_operand.hbm [shape: bf16[1024,1024], index: 0, kind: input, shape index: {}]
  %s1 = inlined_call_operand.hbm [shape: bf16[1024,128], index: 1, kind: input, shape index: {}]
  %s2 = inlined_call_operand.hbm [shape: f32[1024,128], index: 2, kind: input, shape index: {}]
  %s3 = inlined_call_operand.hbm [shape: f32[1024,128], index: 3, kind: output, shape index: {}]
  %s4 = sld [smem:[#allocation0]]
  $region65: #{tpu_custom_call.1} parent=0
    _
  %s6 = ssub.s32 1, %s4
  %s7 = scalar_select 0, %s6, %s4
  $region1: #{tpu_custom_call.1} parent=0
    #allocation4 [shape = 'u8[524288]{0}', space=vmem, size = 0x80000, scoped, tag = 'input window, operand 0']
    #allocation5 [shape = 's32[2]{0}', space=sflag, size = 0x8, scoped, tag = 'scoped memory for tpu_custom_call.1']
    #allocation6 [shape = 's32[2]{0}', space=sflag, size = 0x8, scoped, tag = 'scoped memory for tpu_custom_call.1']
    #allocation7 [shape = 'u8[262144]{0}', space=vmem, size = 0x40000, scoped, tag = 'input window, operand 1']
    #allocation8 [shape = 's32[2]{0}', space=sflag, size = 0x8, scoped, tag = 'scoped memory for tpu_custom_call.1']
    #allocation9 [shape = 'u8[262144]{0}', space=vmem, size = 0x40000, scoped, tag = 'input window, operand 2']
    #allocation10 [shape = 'u8[262144]{0}', space=vmem, size = 0x40000, scoped, tag = 'output window, operand 0']
    %8 = vsyncpa [#allocation5], 0
    %s9 = scalar_lea.sflag [#allocation5], 1
    %10 = vsyncpa %s9, 0
    %11 = vsyncpa [#allocation8], 0
    %s12 = scalar_lea.sflag [#allocation8], 1
    %13 = vsyncpa %s12, 0
    %14 = vsyncpa [#allocation6], 0
    %s15 = scalar_lea.sflag [#allocation6], 1
    %16 = vsyncpa %s15, 0
    loop: start=0, step=1, limit=10
    $region2: #{tpu_custom_call.1} parent=1 // loop_pre_header
      _
    $region3: #{tpu_custom_call.1} parent=1 // loop_header
      %s18 = sphi 0, %s22
      %p19 = scmp.ge.s32.totalorder %s18, 10
      %s25 = sphi 0, %s37
      %s26 = sphi 0, %s33
      %s27 = sphi 0, %s25
      %s28 = sphi 0, %s26
      %s29 = sphi 0, %s27
      %s30 = sphi 0, %s28
      %s42 = sphi 0, %s44
      %s45 = sphi 0, %s42
      %s46 = sphi 0, %s45
      %s62 = sphi 0, %s46
      %s68 = sphi 0, %s70
      %s71 = sphi 0, %s68
      %s72 = sphi 0, %s71
      %s88 = sphi 0, %s72
      %s94 = sphi 0, %s96
      %s97 = sphi 0, %s94
      %s98 = sphi 0, %s97
      %s114 = sphi 0, %s98
      %s120 = sphi 0, %s122
      %s123 = sphi 0, %s120
      %s124 = sphi 0, %s123
      %s140 = sphi 0, %s124
    $region4: #{tpu_custom_call.1} parent=1 // loop_header_branch
      %21 = sbr.rel (%p19) target = $region8
    $region5: #{tpu_custom_call.1} parent=1 // loop_body
      %s23 = ssub.s32 %s18, 1
      %s24 = ssub.s32 %s18, 2
      %s31 = sadd.s32 1, %s26
      %p32 = scmp.ge.s32.totalorder %s31, 2
      %s33 = scalar_select %p32, 0, %s31
      %s34 = sadd.s32 1, %s25
      %s35 = scalar_select %p32, %s34, %s25
      %p36 = scmp.ge.s32.totalorder %s35, 4
      %s37 = scalar_select %p36, 0, %s35
      %s38 = ssub.s32 %s25, %s37
      %s39 = ssub.s32 %s26, %s33
      %s40 = sor.u32 %s38, %s39
      %p41 = scmp.eq.s32.totalorder %s40, 0
      %s43 = sadd.s32 %s42, 1
      %s44 = scalar_select %p41, %s42, %s43
      %p47 = pneg %p41
      %p48 = scmp.eq.s32.totalorder %s18, 7
      %p49 = por %p47, %p48
      %p50 = scmp.ne.s32.totalorder %s42, %s45
      %p51 = scmp.eq.s32.totalorder %s18, 0
      %p52 = por %p50, %p51
      %p53 = scmp.ne.s32.totalorder %s42, %s45
      %p54 = scmp.eq.s32.totalorder %s23, 7
      %p55 = por %p53, %p54
      %p56 = scmp.ne.s32.totalorder %s45, %s46
      %p57 = scmp.eq.s32.totalorder %s23, 0
      %p58 = por %p56, %p57
      %p59 = scmp.ne.s32.totalorder %s45, %s46
      %p60 = scmp.eq.s32.totalorder %s24, 7
      %p61 = por %p59, %p60
      %p63 = scmp.ne.s32.totalorder %s46, %s62
      %p64 = scmp.eq.s32.totalorder %s24, 0
      %p65 = por %p63, %p64
      %s66 = ssub.s32 %s26, %s33
      %p67 = scmp.eq.s32.totalorder %s66, 0
      %s69 = sadd.s32 %s68, 1
      %s70 = scalar_select %p67, %s68, %s69
      %p73 = pneg %p67
      %p74 = scmp.eq.s32.totalorder %s18, 7
      %p75 = por %p73, %p74
      %p76 = scmp.ne.s32.totalorder %s68, %s71
      %p77 = scmp.eq.s32.totalorder %s18, 0
      %p78 = por %p76, %p77
      %p79 = scmp.ne.s32.totalorder %s68, %s71
      %p80 = scmp.eq.s32.totalorder %s23, 7
      %p81 = por %p79, %p80
      %p82 = scmp.ne.s32.totalorder %s71, %s72
      %p83 = scmp.eq.s32.totalorder %s23, 0
      %p84 = por %p82, %p83
      %p85 = scmp.ne.s32.totalorder %s71, %s72
      %p86 = scmp.eq.s32.totalorder %s24, 7
      %p87 = por %p85, %p86
      %p89 = scmp.ne.s32.totalorder %s72, %s88
      %p90 = scmp.eq.s32.totalorder %s24, 0
      %p91 = por %p89, %p90
      %s92 = ssub.s32 %s25, %s37
      %p93 = scmp.eq.s32.totalorder %s92, 0
      %s95 = sadd.s32 %s94, 1
      %s96 = scalar_select %p93, %s94, %s95
      %p99 = pneg %p93
      %p100 = scmp.eq.s32.totalorder %s18, 7
      %p101 = por %p99, %p100
      %p102 = scmp.ne.s32.totalorder %s94, %s97
      %p103 = scmp.eq.s32.totalorder %s18, 0
      %p104 = por %p102, %p103
      %p105 = scmp.ne.s32.totalorder %s94, %s97
      %p106 = scmp.eq.s32.totalorder %s23, 7
      %p107 = por %p105, %p106
      %p108 = scmp.ne.s32.totalorder %s97, %s98
      %p109 = scmp.eq.s32.totalorder %s23, 0
      %p110 = por %p108, %p109
      %p111 = scmp.ne.s32.totalorder %s97, %s98
      %p112 = scmp.eq.s32.totalorder %s24, 7
      %p113 = por %p111, %p112
      %p115 = scmp.ne.s32.totalorder %s98, %s114
      %p116 = scmp.eq.s32.totalorder %s24, 0
      %p117 = por %p115, %p116
      %s118 = ssub.s32 %s25, %s37
      %p119 = scmp.eq.s32.totalorder %s118, 0
      %s121 = sadd.s32 %s120, 1
      %s122 = scalar_select %p119, %s120, %s121
      %p125 = pneg %p119
      %p126 = scmp.eq.s32.totalorder %s18, 7
      %p127 = por %p125, %p126
      %p128 = scmp.ne.s32.totalorder %s120, %s123
      %p129 = scmp.eq.s32.totalorder %s18, 0
      %p130 = por %p128, %p129
      %p131 = scmp.ne.s32.totalorder %s120, %s123
      %p132 = scmp.eq.s32.totalorder %s23, 7
      %p133 = por %p131, %p132
      %p134 = scmp.ne.s32.totalorder %s123, %s124
      %p135 = scmp.eq.s32.totalorder %s23, 0
      %p136 = por %p134, %p135
      %p137 = scmp.ne.s32.totalorder %s123, %s124
      %p138 = scmp.eq.s32.totalorder %s24, 7
      %p139 = por %p137, %p138
      %p141 = scmp.ne.s32.totalorder %s124, %s140
      %p142 = scmp.eq.s32.totalorder %s24, 0
      %p143 = por %p141, %p142
      %p144 = scmp.le.s32.totalorder 1, %s18
      %p145 = scmp.lt.s32.totalorder %s18, 9
      %p146 = pnand %p144, %p145
      %p147 = pneg %p146
      // Predicated region
      $region9: #{tpu_custom_call.1} parent=5 // pred_check
        _
      $region10: #{tpu_custom_call.1} parent=5 // pred_check_branch
        %149 = sbr.rel (%p146) target = $region12
      $region11: #{tpu_custom_call.1} parent=5 // pred_region
        %s150 = ssub.s32 %s18, 1
      $region12: #{tpu_custom_call.1} parent=5 // pred_fallthru
        _
      %p151 = scmp.lt.s32.totalorder %s18, 8
      // Predicated region
      $region13: #{tpu_custom_call.1} parent=5 // pred_check
        %p152 = pneg %p151
      $region14: #{tpu_custom_call.1} parent=5 // pred_check_branch
        %154 = sbr.rel (%p152) target = $region16
      $region15: #{tpu_custom_call.1} parent=5 // pred_region
        // Predicated region
        $region17: #{tpu_custom_call.1} parent=15 // pred_check
          %p155 = pneg %p52
        $region18: #{tpu_custom_call.1} parent=15 // pred_check_branch
          %157 = sbr.rel (%p155) target = $region20
        $region19: #{tpu_custom_call.1} parent=15 // pred_region
          %s158 = sand.u32 %s42, 1
          %s159 = scalar_lea.sflag [#allocation5], %s158
          %s160 = sand.u32 %s42, 1
          %s161 = smul.addr %s160, 512
          %s162 = scalar_lea.vmem [#allocation4], %s161
          %s163 = smul.u32 32, %s25
          %s164 = smul.u32 4, %s26
          %s166 = ssub.s32 8192, 8192
          %167 = vsyncadd %s159, %s166
          %s168 = smul.addr %s163, 8
          %s169 = sadd.s32 %s164, %s168
          %s170 = smul.addr %s169, 64
          %s171 = scalar_lea.hbm %s0, %s170
          %s172 = sshll.u32 %s162, 4
          %s173 = int_to_ptr.vmem [resolvable:$true] %s172
          %178 = dma.hbm_to_vmem [thread:$0]  %s171, 8192, %s173, %s159, 512, 256, 16
        $region20: #{tpu_custom_call.1} parent=15 // pred_fallthru
          _
        // Predicated region
        $region21: #{tpu_custom_call.1} parent=15 // pred_check
          %p179 = pneg %p78
        $region22: #{tpu_custom_call.1} parent=15 // pred_check_branch
          %181 = sbr.rel (%p179) target = $region24
        $region23: #{tpu_custom_call.1} parent=15 // pred_region
          %s182 = sand.u32 %s18, 1
          %s183 = scalar_lea.sflag [#allocation8], %s182
          %s184 = sand.u32 %s68, 1
          %s185 = smul.addr %s184, 256
          %s186 = scalar_lea.vmem [#allocation7], %s185
          %s187 = smul.u32 64, %s26
          %s189 = ssub.s32 4096, 4096
          %190 = vsyncadd %s183, %s189
          %s191 = smul.addr %s187, 64
          %s192 = scalar_lea.hbm %s1, %s191
          %s193 = sshll.u32 %s186, 4
          %s194 = int_to_ptr.vmem [resolvable:$true] %s193
          %199 = dma.hbm_to_vmem [thread:$0]  %s192, 4096, %s194, %s183, 64, 64, 4
        $region24: #{tpu_custom_call.1} parent=15 // pred_fallthru
          _
        // Predicated region
        $region25: #{tpu_custom_call.1} parent=15 // pred_check
          %p200 = pneg %p104
        $region26: #{tpu_custom_call.1} parent=15 // pred_check_branch
          %202 = sbr.rel (%p200) target = $region28
        $region27: #{tpu_custom_call.1} parent=15 // pred_region
          %s203 = sand.u32 %s18, 1
          %s204 = scalar_lea.sflag [#allocation8], %s203
          %s205 = sand.u32 %s94, 1
          %s206 = smul.addr %s205, 256
          %s207 = scalar_lea.vmem [#allocation9], %s206
          %s208 = smul.u32 32, %s25
          %s210 = ssub.s32 4096, 4096
          %211 = vsyncadd %s204, %s210
          %s212 = smul.addr %s208, 128
          %s213 = scalar_lea.hbm %s2, %s212
          %s214 = sshll.u32 %s207, 4
          %s215 = int_to_ptr.vmem [resolvable:$true] %s214
          %220 = dma.hbm_to_vmem [thread:$0]  %s213, 4096, %s215, %s204, 128, 128, 8
        $region28: #{tpu_custom_call.1} parent=15 // pred_fallthru
          _
      $region16: #{tpu_custom_call.1} parent=5 // pred_fallthru
        _
      %p221 = scmp.le.s32.totalorder 1, %s18
      %p222 = scmp.lt.s32.totalorder %s18, 9
      %p223 = pnand %p221, %p222
      %p224 = pneg %p223
      // Predicated region
      $region29: #{tpu_custom_call.1} parent=5 // pred_check
        _
      $region30: #{tpu_custom_call.1} parent=5 // pred_check_branch
        %226 = sbr.rel (%p223) target = $region32
      $region31: #{tpu_custom_call.1} parent=5 // pred_region
        %s227 = ssub.s32 %s18, 1
        %s228 = sand.u32 %s45, 1
        %s229 = scalar_lea.sflag [#allocation5], %s228
        %s230 = sand.u32 %s45, 1
        %s231 = smul.addr %s230, 512
        %s232 = scalar_lea.vmem [#allocation4], %s231
        // Predicated region
        $region33: #{tpu_custom_call.1} parent=31 // pred_check
          %p233 = pneg %p58
        $region34: #{tpu_custom_call.1} parent=31 // pred_check_branch
          %235 = sbr.rel (%p233) target = $region36
        $region35: #{tpu_custom_call.1} parent=31 // pred_region
          %236 = dma.done %s229, 8192
        $region36: #{tpu_custom_call.1} parent=31 // pred_fallthru
          _
        %s237 = sand.u32 %s23, 1
        %s238 = scalar_lea.sflag [#allocation8], %s237
        %s239 = sand.u32 %s71, 1
        %s240 = smul.addr %s239, 256
        %s241 = scalar_lea.vmem [#allocation7], %s240
        // Predicated region
        $region37: #{tpu_custom_call.1} parent=31 // pred_check
          %p242 = pneg %p84
        $region38: #{tpu_custom_call.1} parent=31 // pred_check_branch
          %244 = sbr.rel (%p242) target = $region40
        $region39: #{tpu_custom_call.1} parent=31 // pred_region
          %245 = dma.done %s238, 4096
        $region40: #{tpu_custom_call.1} parent=31 // pred_fallthru
          _
        %s246 = sand.u32 %s23, 1
        %s247 = scalar_lea.sflag [#allocation8], %s246
        %s248 = sand.u32 %s97, 1
        %s249 = smul.addr %s248, 256
        %s250 = scalar_lea.vmem [#allocation9], %s249
        // Predicated region
        $region41: #{tpu_custom_call.1} parent=31 // pred_check
          %p251 = pneg %p110
        $region42: #{tpu_custom_call.1} parent=31 // pred_check_branch
          %253 = sbr.rel (%p251) target = $region44
        $region43: #{tpu_custom_call.1} parent=31 // pred_region
          %254 = dma.done %s247, 4096
        $region44: #{tpu_custom_call.1} parent=31 // pred_fallthru
          _
        %s255 = sand.u32 %s45, 1
        %s256 = scalar_lea.sflag [#allocation5], %s255
        %s257 = sand.u32 %s45, 1
        %s258 = smul.addr %s257, 512
        %s259 = scalar_lea.vmem [#allocation4], %s258
        %p260 = pneg %p58
        %p261 = pneg %p55
        %s262 = sand.u32 %s23, 1
        %s263 = scalar_lea.sflag [#allocation8], %s262
        %s264 = sand.u32 %s71, 1
        %s265 = smul.addr %s264, 256
        %s266 = scalar_lea.vmem [#allocation7], %s265
        %p267 = pneg %p84
        %p268 = pneg %p81
        %s269 = sand.u32 %s23, 1
        %s270 = scalar_lea.sflag [#allocation8], %s269
        %s271 = sand.u32 %s97, 1
        %s272 = smul.addr %s271, 256
        %s273 = scalar_lea.vmem [#allocation9], %s272
        %p274 = pneg %p110
        %p275 = pneg %p107
        %p276 = pneg %p136
        %p277 = pneg %p133
        %s278 = sand.u32 %s123, 1
        %s279 = scalar_lea.sflag [#allocation6], %s278
        %s280 = sand.u32 %s123, 1
        %s281 = smul.addr %s280, 256
        %s282 = scalar_lea.vmem [#allocation10], %s281
        %s283 = smul.u32 32, %s27
        %s284 = smul.u32 4, %s28
        %s285 = smul.u32 64, %s28
        %s286 = smul.u32 32, %s27
        %s287 = smul.u32 32, %s27
        %p289 = scmp.eq.s32.totalorder %s28, 0
        // Predicated region
        $region45: #{tpu_custom_call.1} parent=31 // pred_check
          %p290 = pneg %p289
        $region46: #{tpu_custom_call.1} parent=31 // pred_check_branch
          %292 = sbr.rel (%p290) target = $region48
        $region47: #{tpu_custom_call.1} parent=31 // pred_region
          %293 = vst [vmem:[#allocation2] sm:$0xff] 0.0
          %294 = vst [vmem:[#allocation2 + $0x8] sm:$0xff] 0.0
          %295 = vst [vmem:[#allocation2 + $0x10] sm:$0xff] 0.0
          %296 = vst [vmem:[#allocation2 + $0x18] sm:$0xff] 0.0
          %297 = vst [vmem:[#allocation2 + $0x20] sm:$0xff] 0.0
          %298 = vst [vmem:[#allocation2 + $0x28] sm:$0xff] 0.0
          %299 = vst [vmem:[#allocation2 + $0x30] sm:$0xff] 0.0
          %300 = vst [vmem:[#allocation2 + $0x38] sm:$0xff] 0.0
          %301 = vst [vmem:[#allocation2 + $0x40] sm:$0xff] 0.0
          %302 = vst [vmem:[#allocation2 + $0x48] sm:$0xff] 0.0
          %303 = vst [vmem:[#allocation2 + $0x50] sm:$0xff] 0.0
          %304 = vst [vmem:[#allocation2 + $0x58] sm:$0xff] 0.0
          %305 = vst [vmem:[#allocation2 + $0x60] sm:$0xff] 0.0
          %306 = vst [vmem:[#allocation2 + $0x68] sm:$0xff] 0.0
          %307 = vst [vmem:[#allocation2 + $0x70] sm:$0xff] 0.0
          %308 = vst [vmem:[#allocation2 + $0x78] sm:$0xff] 0.0
          %309 = vst [vmem:[#allocation2 + $0x80] sm:$0xff] 0.0
          %310 = vst [vmem:[#allocation2 + $0x88] sm:$0xff] 0.0
          %311 = vst [vmem:[#allocation2 + $0x90] sm:$0xff] 0.0
          %312 = vst [vmem:[#allocation2 + $0x98] sm:$0xff] 0.0
          %313 = vst [vmem:[#allocation2 + $0xa0] sm:$0xff] 0.0
          %314 = vst [vmem:[#allocation2 + $0xa8] sm:$0xff] 0.0
          %315 = vst [vmem:[#allocation2 + $0xb0] sm:$0xff] 0.0
          %316 = vst [vmem:[#allocation2 + $0xb8] sm:$0xff] 0.0
          %317 = vst [vmem:[#allocation2 + $0xc0] sm:$0xff] 0.0
          %318 = vst [vmem:[#allocation2 + $0xc8] sm:$0xff] 0.0
          %319 = vst [vmem:[#allocation2 + $0xd0] sm:$0xff] 0.0
          %320 = vst [vmem:[#allocation2 + $0xd8] sm:$0xff] 0.0
          %321 = vst [vmem:[#allocation2 + $0xe0] sm:$0xff] 0.0
          %322 = vst [vmem:[#allocation2 + $0xe8] sm:$0xff] 0.0
          %323 = vst [vmem:[#allocation2 + $0xf0] sm:$0xff] 0.0
          %324 = vst [vmem:[#allocation2 + $0xf8] sm:$0xff] 0.0
          %vm325 = vcmask 7168
          %326 = vst.msk [vmem:[#allocation3] sm:$0xff] %vm325, 0.0
          %327 = vst.msk [vmem:[#allocation3 + $0x8] sm:$0xff] %vm325, 0.0
          %328 = vst.msk [vmem:[#allocation3 + $0x10] sm:$0xff] %vm325, 0.0
          %329 = vst.msk [vmem:[#allocation3 + $0x18] sm:$0xff] %vm325, 0.0
          %330 = vst.msk [vmem:[#allocation3 + $0x20] sm:$0xff] %vm325, 0.0
          %331 = vst.msk [vmem:[#allocation3 + $0x28] sm:$0xff] %vm325, 0.0
          %332 = vst.msk [vmem:[#allocation3 + $0x30] sm:$0xff] %vm325, 0.0
          %333 = vst.msk [vmem:[#allocation3 + $0x38] sm:$0xff] %vm325, 0.0
          %334 = vst.msk [vmem:[#allocation3 + $0x40] sm:$0xff] %vm325, 0.0
          %335 = vst.msk [vmem:[#allocation3 + $0x48] sm:$0xff] %vm325, 0.0
          %336 = vst.msk [vmem:[#allocation3 + $0x50] sm:$0xff] %vm325, 0.0
          %337 = vst.msk [vmem:[#allocation3 + $0x58] sm:$0xff] %vm325, 0.0
          %338 = vst.msk [vmem:[#allocation3 + $0x60] sm:$0xff] %vm325, 0.0
          %339 = vst.msk [vmem:[#allocation3 + $0x68] sm:$0xff] %vm325, 0.0
          %340 = vst.msk [vmem:[#allocation3 + $0x70] sm:$0xff] %vm325, 0.0
          %341 = vst.msk [vmem:[#allocation3 + $0x78] sm:$0xff] %vm325, 0.0
          %342 = vst.msk [vmem:[#allocation3 + $0x80] sm:$0xff] %vm325, 0.0
          %343 = vst.msk [vmem:[#allocation3 + $0x88] sm:$0xff] %vm325, 0.0
          %344 = vst.msk [vmem:[#allocation3 + $0x90] sm:$0xff] %vm325, 0.0
          %345 = vst.msk [vmem:[#allocation3 + $0x98] sm:$0xff] %vm325, 0.0
          %346 = vst.msk [vmem:[#allocation3 + $0xa0] sm:$0xff] %vm325, 0.0
          %347 = vst.msk [vmem:[#allocation3 + $0xa8] sm:$0xff] %vm325, 0.0
          %348 = vst.msk [vmem:[#allocation3 + $0xb0] sm:$0xff] %vm325, 0.0
          %349 = vst.msk [vmem:[#allocation3 + $0xb8] sm:$0xff] %vm325, 0.0
          %350 = vst.msk [vmem:[#allocation3 + $0xc0] sm:$0xff] %vm325, 0.0
          %351 = vst.msk [vmem:[#allocation3 + $0xc8] sm:$0xff] %vm325, 0.0
          %352 = vst.msk [vmem:[#allocation3 + $0xd0] sm:$0xff] %vm325, 0.0
          %353 = vst.msk [vmem:[#allocation3 + $0xd8] sm:$0xff] %vm325, 0.0
          %354 = vst.msk [vmem:[#allocation3 + $0xe0] sm:$0xff] %vm325, 0.0
          %355 = vst.msk [vmem:[#allocation3 + $0xe8] sm:$0xff] %vm325, 0.0
          %356 = vst.msk [vmem:[#allocation3 + $0xf0] sm:$0xff] %vm325, 0.0
          %357 = vst.msk [vmem:[#allocation3 + $0xf8] sm:$0xff] %vm325, 0.0
        $region48: #{tpu_custom_call.1} parent=31 // pred_fallthru
          _
        %v358 = vld [vmem:[%s232] sm:$0xff]
        %v359 = vld [vmem:[%s232 + $0x8] sm:$0xff]
        %v360 = vld [vmem:[%s232 + $0x10] sm:$0xff]
        %v361 = vld [vmem:[%s232 + $0x18] sm:$0xff]
        %v362 = vld [vmem:[%s232 + $0x20] sm:$0xff]
        %v363 = vld [vmem:[%s232 + $0x28] sm:$0xff]
        %v364 = vld [vmem:[%s232 + $0x30] sm:$0xff]
        %v365 = vld [vmem:[%s232 + $0x38] sm:$0xff]
        %v366 = vld [vmem:[%s232 + $0x40] sm:$0xff]
        %v367 = vld [vmem:[%s232 + $0x48] sm:$0xff]
        %v368 = vld [vmem:[%s232 + $0x50] sm:$0xff]
        %v369 = vld [vmem:[%s232 + $0x58] sm:$0xff]
        %v370 = vld [vmem:[%s232 + $0x60] sm:$0xff]
        %v371 = vld [vmem:[%s232 + $0x68] sm:$0xff]
        %v372 = vld [vmem:[%s232 + $0x70] sm:$0xff]
        %v373 = vld [vmem:[%s232 + $0x78] sm:$0xff]
        %v374 = vld [vmem:[%s232 + $0x80] sm:$0xff]
        %v375 = vld [vmem:[%s232 + $0x88] sm:$0xff]
        %v376 = vld [vmem:[%s232 + $0x90] sm:$0xff]
        %v377 = vld [vmem:[%s232 + $0x98] sm:$0xff]
        %v378 = vld [vmem:[%s232 + $0xa0] sm:$0xff]
        %v379 = vld [vmem:[%s232 + $0xa8] sm:$0xff]
        %v380 = vld [vmem:[%s232 + $0xb0] sm:$0xff]
        %v381 = vld [vmem:[%s232 + $0xb8] sm:$0xff]
        %v382 = vld [vmem:[%s232 + $0xc0] sm:$0xff]
        %v383 = vld [vmem:[%s232 + $0xc8] sm:$0xff]
        %v384 = vld [vmem:[%s232 + $0xd0] sm:$0xff]
        %v385 = vld [vmem:[%s232 + $0xd8] sm:$0xff]
        %v386 = vld [vmem:[%s232 + $0xe0] sm:$0xff]
        %v387 = vld [vmem:[%s232 + $0xe8] sm:$0xff]
        %v388 = vld [vmem:[%s232 + $0xf0] sm:$0xff]
        %v389 = vld [vmem:[%s232 + $0xf8] sm:$0xff]
        %v390 = vld [vmem:[%s232 + $0x100] sm:$0xff]
        %v391 = vld [vmem:[%s232 + $0x108] sm:$0xff]
        %v392 = vld [vmem:[%s232 + $0x110] sm:$0xff]
        %v393 = vld [vmem:[%s232 + $0x118] sm:$0xff]
        %v394 = vld [vmem:[%s232 + $0x120] sm:$0xff]
        %v395 = vld [vmem:[%s232 + $0x128] sm:$0xff]
        %v396 = vld [vmem:[%s232 + $0x130] sm:$0xff]
        %v397 = vld [vmem:[%s232 + $0x138] sm:$0xff]
        %v398 = vld [vmem:[%s232 + $0x140] sm:$0xff]
        %v399 = vld [vmem:[%s232 + $0x148] sm:$0xff]
        %v400 = vld [vmem:[%s232 + $0x150] sm:$0xff]
        %v401 = vld [vmem:[%s232 + $0x158] sm:$0xff]
        %v402 = vld [vmem:[%s232 + $0x160] sm:$0xff]
        %v403 = vld [vmem:[%s232 + $0x168] sm:$0xff]
        %v404 = vld [vmem:[%s232 + $0x170] sm:$0xff]
        %v405 = vld [vmem:[%s232 + $0x178] sm:$0xff]
        %v406 = vld [vmem:[%s232 + $0x180] sm:$0xff]
        %v407 = vld [vmem:[%s232 + $0x188] sm:$0xff]
        %v408 = vld [vmem:[%s232 + $0x190] sm:$0xff]
        %v409 = vld [vmem:[%s232 + $0x198] sm:$0xff]
        %v410 = vld [vmem:[%s232 + $0x1a0] sm:$0xff]
        %v411 = vld [vmem:[%s232 + $0x1a8] sm:$0xff]
        %v412 = vld [vmem:[%s232 + $0x1b0] sm:$0xff]
        %v413 = vld [vmem:[%s232 + $0x1b8] sm:$0xff]
        %v414 = vld [vmem:[%s232 + $0x1c0] sm:$0xff]
        %v415 = vld [vmem:[%s232 + $0x1c8] sm:$0xff]
        %v416 = vld [vmem:[%s232 + $0x1d0] sm:$0xff]
        %v417 = vld [vmem:[%s232 + $0x1d8] sm:$0xff]
        %v418 = vld [vmem:[%s232 + $0x1e0] sm:$0xff]
        %v419 = vld [vmem:[%s232 + $0x1e8] sm:$0xff]
        %v420 = vld [vmem:[%s232 + $0x1f0] sm:$0xff]
        %v421 = vld [vmem:[%s232 + $0x1f8] sm:$0xff]
        %v422 = vld [vmem:[#allocation2] sm:$0xff]
        %v423 = vld [vmem:[#allocation2 + $0x8] sm:$0xff]
        %v424 = vld [vmem:[#allocation2 + $0x10] sm:$0xff]
        %v425 = vld [vmem:[#allocation2 + $0x18] sm:$0xff]
        %v426 = vld [vmem:[#allocation2 + $0x20] sm:$0xff]
        %v427 = vld [vmem:[#allocation2 + $0x28] sm:$0xff]
        %v428 = vld [vmem:[#allocation2 + $0x30] sm:$0xff]
        %v429 = vld [vmem:[#allocation2 + $0x38] sm:$0xff]
        %v430 = vld [vmem:[#allocation2 + $0x40] sm:$0xff]
        %v431 = vld [vmem:[#allocation2 + $0x48] sm:$0xff]
        %v432 = vld [vmem:[#allocation2 + $0x50] sm:$0xff]
        %v433 = vld [vmem:[#allocation2 + $0x58] sm:$0xff]
        %v434 = vld [vmem:[#allocation2 + $0x60] sm:$0xff]
        %v435 = vld [vmem:[#allocation2 + $0x68] sm:$0xff]
        %v436 = vld [vmem:[#allocation2 + $0x70] sm:$0xff]
        %v437 = vld [vmem:[#allocation2 + $0x78] sm:$0xff]
        %v438 = vld [vmem:[#allocation2 + $0x80] sm:$0xff]
        %v439 = vld [vmem:[#allocation2 + $0x88] sm:$0xff]
        %v440 = vld [vmem:[#allocation2 + $0x90] sm:$0xff]
        %v441 = vld [vmem:[#allocation2 + $0x98] sm:$0xff]
        %v442 = vld [vmem:[#allocation2 + $0xa0] sm:$0xff]
        %v443 = vld [vmem:[#allocation2 + $0xa8] sm:$0xff]
        %v444 = vld [vmem:[#allocation2 + $0xb0] sm:$0xff]
        %v445 = vld [vmem:[#allocation2 + $0xb8] sm:$0xff]
        %v446 = vld [vmem:[#allocation2 + $0xc0] sm:$0xff]
        %v447 = vld [vmem:[#allocation2 + $0xc8] sm:$0xff]
        %v448 = vld [vmem:[#allocation2 + $0xd0] sm:$0xff]
        %v449 = vld [vmem:[#allocation2 + $0xd8] sm:$0xff]
        %v450 = vld [vmem:[#allocation2 + $0xe0] sm:$0xff]
        %v451 = vld [vmem:[#allocation2 + $0xe8] sm:$0xff]
        %v452 = vld [vmem:[#allocation2 + $0xf0] sm:$0xff]
        %v453 = vld [vmem:[#allocation2 + $0xf8] sm:$0xff]
        %v454 = vld [vmem:[%s241] sm:$0xf]
        %v455 = vld [vmem:[%s241 + $0x4] sm:$0xf]
        %v456 = vld [vmem:[%s241 + $0x8] sm:$0xf]
        %v457 = vld [vmem:[%s241 + $0xc] sm:$0xf]
        %v458 = vld [vmem:[%s241 + $0x10] sm:$0xf]
        %v459 = vld [vmem:[%s241 + $0x14] sm:$0xf]
        %v460 = vld [vmem:[%s241 + $0x18] sm:$0xf]
        %v461 = vld [vmem:[%s241 + $0x1c] sm:$0xf]
        %v462 = vld [vmem:[%s241 + $0x20] sm:$0xf]
        %v463 = vld [vmem:[%s241 + $0x24] sm:$0xf]
        %v464 = vld [vmem:[%s241 + $0x28] sm:$0xf]
        %v465 = vld [vmem:[%s241 + $0x2c] sm:$0xf]
        %v466 = vld [vmem:[%s241 + $0x30] sm:$0xf]
        %v467 = vld [vmem:[%s241 + $0x34] sm:$0xf]
        %v468 = vld [vmem:[%s241 + $0x38] sm:$0xf]
        %v469 = vld [vmem:[%s241 + $0x3c] sm:$0xf]
        %v470 = vld [vmem:[%s241 + $0x40] sm:$0xf]
        %v471 = vld [vmem:[%s241 + $0x44] sm:$0xf]
        %v472 = vld [vmem:[%s241 + $0x48] sm:$0xf]
        %v473 = vld [vmem:[%s241 + $0x4c] sm:$0xf]
        %v474 = vld [vmem:[%s241 + $0x50] sm:$0xf]
        %v475 = vld [vmem:[%s241 + $0x54] sm:$0xf]
        %v476 = vld [vmem:[%s241 + $0x58] sm:$0xf]
        %v477 = vld [vmem:[%s241 + $0x5c] sm:$0xf]
        %v478 = vld [vmem:[%s241 + $0x60] sm:$0xf]
        %v479 = vld [vmem:[%s241 + $0x64] sm:$0xf]
        %v480 = vld [vmem:[%s241 + $0x68] sm:$0xf]
        %v481 = vld [vmem:[%s241 + $0x6c] sm:$0xf]
        %v482 = vld [vmem:[%s241 + $0x70] sm:$0xf]
        %v483 = vld [vmem:[%s241 + $0x74] sm:$0xf]
        %v484 = vld [vmem:[%s241 + $0x78] sm:$0xf]
        %v485 = vld [vmem:[%s241 + $0x7c] sm:$0xf]
        %v486 = vld [vmem:[%s241 + $0x80] sm:$0xf]
        %v487 = vld [vmem:[%s241 + $0x84] sm:$0xf]
        %v488 = vld [vmem:[%s241 + $0x88] sm:$0xf]
        %v489 = vld [vmem:[%s241 + $0x8c] sm:$0xf]
        %v490 = vld [vmem:[%s241 + $0x90] sm:$0xf]
        %v491 = vld [vmem:[%s241 + $0x94] sm:$0xf]
        %v492 = vld [vmem:[%s241 + $0x98] sm:$0xf]
        %v493 = vld [vmem:[%s241 + $0x9c] sm:$0xf]
        %v494 = vld [vmem:[%s241 + $0xa0] sm:$0xf]
        %v495 = vld [vmem:[%s241 + $0xa4] sm:$0xf]
        %v496 = vld [vmem:[%s241 + $0xa8] sm:$0xf]
        %v497 = vld [vmem:[%s241 + $0xac] sm:$0xf]
        %v498 = vld [vmem:[%s241 + $0xb0] sm:$0xf]
        %v499 = vld [vmem:[%s241 + $0xb4] sm:$0xf]
        %v500 = vld [vmem:[%s241 + $0xb8] sm:$0xf]
        %v501 = vld [vmem:[%s241 + $0xbc] sm:$0xf]
        %v502 = vld [vmem:[%s241 + $0xc0] sm:$0xf]
        %v503 = vld [vmem:[%s241 + $0xc4] sm:$0xf]
        %v504 = vld [vmem:[%s241 + $0xc8] sm:$0xf]
        %v505 = vld [vmem:[%s241 + $0xcc] sm:$0xf]
        %v506 = vld [vmem:[%s241 + $0xd0] sm:$0xf]
        %v507 = vld [vmem:[%s241 + $0xd4] sm:$0xf]
        %v508 = vld [vmem:[%s241 + $0xd8] sm:$0xf]
        %v509 = vld [vmem:[%s241 + $0xdc] sm:$0xf]
        %v510 = vld [vmem:[%s241 + $0xe0] sm:$0xf]
        %v511 = vld [vmem:[%s241 + $0xe4] sm:$0xf]
        %v512 = vld [vmem:[%s241 + $0xe8] sm:$0xf]
        %v513 = vld [vmem:[%s241 + $0xec] sm:$0xf]
        %v514 = vld [vmem:[%s241 + $0xf0] sm:$0xf]
        %v515 = vld [vmem:[%s241 + $0xf4] sm:$0xf]
        %v516 = vld [vmem:[%s241 + $0xf8] sm:$0xf]
        %v517 = vld [vmem:[%s241 + $0xfc] sm:$0xf]
        %v582 = vunpack.c.l.b16 %v358
        %v583 = vunpack.c.h.b16 %v358
        %v584 = vunpack.c.l.b16 %v359
        %v585 = vunpack.c.h.b16 %v359
        %v586 = vunpack.c.l.b16 %v360
        %v587 = vunpack.c.h.b16 %v360
        %v588 = vunpack.c.l.b16 %v361
        %v589 = vunpack.c.h.b16 %v361
        %v590 = vunpack.c.l.b16 %v362
        %v591 = vunpack.c.h.b16 %v362
        %v592 = vunpack.c.l.b16 %v363
        %v593 = vunpack.c.h.b16 %v363
        %v594 = vunpack.c.l.b16 %v364
        %v595 = vunpack.c.h.b16 %v364
        %v596 = vunpack.c.l.b16 %v365
        %v597 = vunpack.c.h.b16 %v365
        %v598 = vunpack.c.l.b16 %v366
        %v599 = vunpack.c.h.b16 %v366
        %v600 = vunpack.c.l.b16 %v367
        %v601 = vunpack.c.h.b16 %v367
        %v602 = vunpack.c.l.b16 %v368
        %v603 = vunpack.c.h.b16 %v368
        %v604 = vunpack.c.l.b16 %v369
        %v605 = vunpack.c.h.b16 %v369
        %v606 = vunpack.c.l.b16 %v370
        %v607 = vunpack.c.h.b16 %v370
        %v608 = vunpack.c.l.b16 %v371
        %v609 = vunpack.c.h.b16 %v371
        %v610 = vunpack.c.l.b16 %v372
        %v611 = vunpack.c.h.b16 %v372
        %v612 = vunpack.c.l.b16 %v373
        %v613 = vunpack.c.h.b16 %v373
        %v614 = vunpack.c.l.b16 %v374
        %v615 = vunpack.c.h.b16 %v374
        %v616 = vunpack.c.l.b16 %v375
        %v617 = vunpack.c.h.b16 %v375
        %v618 = vunpack.c.l.b16 %v376
        %v619 = vunpack.c.h.b16 %v376
        %v620 = vunpack.c.l.b16 %v377
        %v621 = vunpack.c.h.b16 %v377
        %v622 = vunpack.c.l.b16 %v378
        %v623 = vunpack.c.h.b16 %v378
        %v624 = vunpack.c.l.b16 %v379
        %v625 = vunpack.c.h.b16 %v379
        %v626 = vunpack.c.l.b16 %v380
        %v627 = vunpack.c.h.b16 %v380
        %v628 = vunpack.c.l.b16 %v381
        %v629 = vunpack.c.h.b16 %v381
        %v630 = vunpack.c.l.b16 %v382
        %v631 = vunpack.c.h.b16 %v382
        %v632 = vunpack.c.l.b16 %v383
        %v633 = vunpack.c.h.b16 %v383
        %v634 = vunpack.c.l.b16 %v384
        %v635 = vunpack.c.h.b16 %v384
        %v636 = vunpack.c.l.b16 %v385
        %v637 = vunpack.c.h.b16 %v385
        %v638 = vunpack.c.l.b16 %v386
        %v639 = vunpack.c.h.b16 %v386
        %v640 = vunpack.c.l.b16 %v387
        %v641 = vunpack.c.h.b16 %v387
        %v642 = vunpack.c.l.b16 %v388
        %v643 = vunpack.c.h.b16 %v388
        %v644 = vunpack.c.l.b16 %v389
        %v645 = vunpack.c.h.b16 %v389
        %v646 = vunpack.c.l.b16 %v390
        %v647 = vunpack.c.h.b16 %v390
        %v648 = vunpack.c.l.b16 %v391
        %v649 = vunpack.c.h.b16 %v391
        %v650 = vunpack.c.l.b16 %v392
        %v651 = vunpack.c.h.b16 %v392
        %v652 = vunpack.c.l.b16 %v393
        %v653 = vunpack.c.h.b16 %v393
        %v654 = vunpack.c.l.b16 %v394
        %v655 = vunpack.c.h.b16 %v394
        %v656 = vunpack.c.l.b16 %v395
        %v657 = vunpack.c.h.b16 %v395
        %v658 = vunpack.c.l.b16 %v396
        %v659 = vunpack.c.h.b16 %v396
        %v660 = vunpack.c.l.b16 %v397
        %v661 = vunpack.c.h.b16 %v397
        %v662 = vunpack.c.l.b16 %v398
        %v663 = vunpack.c.h.b16 %v398
        %v664 = vunpack.c.l.b16 %v399
        %v665 = vunpack.c.h.b16 %v399
        %v666 = vunpack.c.l.b16 %v400
        %v667 = vunpack.c.h.b16 %v400
        %v668 = vunpack.c.l.b16 %v401
        %v669 = vunpack.c.h.b16 %v401
        %v670 = vunpack.c.l.b16 %v402
        %v671 = vunpack.c.h.b16 %v402
        %v672 = vunpack.c.l.b16 %v403
        %v673 = vunpack.c.h.b16 %v403
        %v674 = vunpack.c.l.b16 %v404
        %v675 = vunpack.c.h.b16 %v404
        %v676 = vunpack.c.l.b16 %v405
        %v677 = vunpack.c.h.b16 %v405
        %v678 = vunpack.c.l.b16 %v406
        %v679 = vunpack.c.h.b16 %v406
        %v680 = vunpack.c.l.b16 %v407
        %v681 = vunpack.c.h.b16 %v407
        %v682 = vunpack.c.l.b16 %v408
        %v683 = vunpack.c.h.b16 %v408
        %v684 = vunpack.c.l.b16 %v409
        %v685 = vunpack.c.h.b16 %v409
        %v686 = vunpack.c.l.b16 %v410
        %v687 = vunpack.c.h.b16 %v410
        %v688 = vunpack.c.l.b16 %v411
        %v689 = vunpack.c.h.b16 %v411
        %v690 = vunpack.c.l.b16 %v412
        %v691 = vunpack.c.h.b16 %v412
        %v692 = vunpack.c.l.b16 %v413
        %v693 = vunpack.c.h.b16 %v413
        %v694 = vunpack.c.l.b16 %v414
        %v695 = vunpack.c.h.b16 %v414
        %v696 = vunpack.c.l.b16 %v415
        %v697 = vunpack.c.h.b16 %v415
        %v698 = vunpack.c.l.b16 %v416
        %v699 = vunpack.c.h.b16 %v416
        %v700 = vunpack.c.l.b16 %v417
        %v701 = vunpack.c.h.b16 %v417
        %v702 = vunpack.c.l.b16 %v418
        %v703 = vunpack.c.h.b16 %v418
        %v704 = vunpack.c.l.b16 %v419
        %v705 = vunpack.c.h.b16 %v419
        %v706 = vunpack.c.l.b16 %v420
        %v707 = vunpack.c.h.b16 %v420
        %v708 = vunpack.c.l.b16 %v421
        %v709 = vunpack.c.h.b16 %v421
        %v710 = vpack.c.b16 %v586, %v582
        %v711 = vpack.c.b16 %v587, %v583
        %v712 = vpack.c.b16 %v588, %v584
        %v713 = vpack.c.b16 %v589, %v585
        %v714 = vpack.c.b16 %v594, %v590
        %v715 = vpack.c.b16 %v595, %v591
        %v716 = vpack.c.b16 %v596, %v592
        %v717 = vpack.c.b16 %v597, %v593
        %v718 = vpack.c.b16 %v602, %v598
        %v719 = vpack.c.b16 %v603, %v599
        %v720 = vpack.c.b16 %v604, %v600
        %v721 = vpack.c.b16 %v605, %v601
        %v722 = vpack.c.b16 %v610, %v606
        %v723 = vpack.c.b16 %v611, %v607
        %v724 = vpack.c.b16 %v612, %v608
        %v725 = vpack.c.b16 %v613, %v609
        %v726 = vpack.c.b16 %v618, %v614
        %v727 = vpack.c.b16 %v619, %v615
        %v728 = vpack.c.b16 %v620, %v616
        %v729 = vpack.c.b16 %v621, %v617
        %v730 = vpack.c.b16 %v626, %v622
        %v731 = vpack.c.b16 %v627, %v623
        %v732 = vpack.c.b16 %v628, %v624
        %v733 = vpack.c.b16 %v629, %v625
        %v734 = vpack.c.b16 %v634, %v630
        %v735 = vpack.c.b16 %v635, %v631
        %v736 = vpack.c.b16 %v636, %v632
        %v737 = vpack.c.b16 %v637, %v633
        %v738 = vpack.c.b16 %v642, %v638
        %v739 = vpack.c.b16 %v643, %v639
        %v740 = vpack.c.b16 %v644, %v640
        %v741 = vpack.c.b16 %v645, %v641
        %v742 = vpack.c.b16 %v650, %v646
        %v743 = vpack.c.b16 %v651, %v647
        %v744 = vpack.c.b16 %v652, %v648
        %v745 = vpack.c.b16 %v653, %v649
        %v746 = vpack.c.b16 %v658, %v654
        %v747 = vpack.c.b16 %v659, %v655
        %v748 = vpack.c.b16 %v660, %v656
        %v749 = vpack.c.b16 %v661, %v657
        %v750 = vpack.c.b16 %v666, %v662
        %v751 = vpack.c.b16 %v667, %v663
        %v752 = vpack.c.b16 %v668, %v664
        %v753 = vpack.c.b16 %v669, %v665
        %v754 = vpack.c.b16 %v674, %v670
        %v755 = vpack.c.b16 %v675, %v671
        %v756 = vpack.c.b16 %v676, %v672
        %v757 = vpack.c.b16 %v677, %v673
        %v758 = vpack.c.b16 %v682, %v678
        %v759 = vpack.c.b16 %v683, %v679
        %v760 = vpack.c.b16 %v684, %v680
        %v761 = vpack.c.b16 %v685, %v681
        %v762 = vpack.c.b16 %v690, %v686
        %v763 = vpack.c.b16 %v691, %v687
        %v764 = vpack.c.b16 %v692, %v688
        %v765 = vpack.c.b16 %v693, %v689
        %v766 = vpack.c.b16 %v698, %v694
        %v767 = vpack.c.b16 %v699, %v695
        %v768 = vpack.c.b16 %v700, %v696
        %v769 = vpack.c.b16 %v701, %v697
        %v770 = vpack.c.b16 %v706, %v702
        %v771 = vpack.c.b16 %v707, %v703
        %v772 = vpack.c.b16 %v708, %v704
        %v773 = vpack.c.b16 %v709, %v705
        %v902 = vunpack.c.l.b16 %v454
        %v903 = vunpack.c.l.b16 %v455
        %v904 = vunpack.c.l.b16 %v456
        %v905 = vunpack.c.l.b16 %v457
        %v906 = vunpack.c.l.b16 %v458
        %v907 = vunpack.c.l.b16 %v459
        %v908 = vunpack.c.l.b16 %v460
        %v909 = vunpack.c.l.b16 %v461
        %v910 = vunpack.c.l.b16 %v462
        %v911 = vunpack.c.l.b16 %v463
        %v912 = vunpack.c.l.b16 %v464
        %v913 = vunpack.c.l.b16 %v465
        %v914 = vunpack.c.l.b16 %v466
        %v915 = vunpack.c.l.b16 %v467
        %v916 = vunpack.c.l.b16 %v468
        %v917 = vunpack.c.l.b16 %v469
        %v918 = vunpack.c.l.b16 %v470
        %v919 = vunpack.c.l.b16 %v471
        %v920 = vunpack.c.l.b16 %v472
        %v921 = vunpack.c.l.b16 %v473
        %v922 = vunpack.c.l.b16 %v474
        %v923 = vunpack.c.l.b16 %v475
        %v924 = vunpack.c.l.b16 %v476
        %v925 = vunpack.c.l.b16 %v477
        %v926 = vunpack.c.l.b16 %v478
        %v927 = vunpack.c.l.b16 %v479
        %v928 = vunpack.c.l.b16 %v480
        %v929 = vunpack.c.l.b16 %v481
        %v930 = vunpack.c.l.b16 %v482
        %v931 = vunpack.c.l.b16 %v483
        %v932 = vunpack.c.l.b16 %v484
        %v933 = vunpack.c.l.b16 %v485
        %v934 = vunpack.c.l.b16 %v486
        %v935 = vunpack.c.l.b16 %v487
        %v936 = vunpack.c.l.b16 %v488
        %v937 = vunpack.c.l.b16 %v489
        %v938 = vunpack.c.l.b16 %v490
        %v939 = vunpack.c.l.b16 %v491
        %v940 = vunpack.c.l.b16 %v492
        %v941 = vunpack.c.l.b16 %v493
        %v942 = vunpack.c.l.b16 %v494
        %v943 = vunpack.c.l.b16 %v495
        %v944 = vunpack.c.l.b16 %v496
        %v945 = vunpack.c.l.b16 %v497
        %v946 = vunpack.c.l.b16 %v498
        %v947 = vunpack.c.l.b16 %v499
        %v948 = vunpack.c.l.b16 %v500
        %v949 = vunpack.c.l.b16 %v501
        %v950 = vunpack.c.l.b16 %v502
        %v951 = vunpack.c.l.b16 %v503
        %v952 = vunpack.c.l.b16 %v504
        %v953 = vunpack.c.l.b16 %v505
        %v954 = vunpack.c.l.b16 %v506
        %v955 = vunpack.c.l.b16 %v507
        %v956 = vunpack.c.l.b16 %v508
        %v957 = vunpack.c.l.b16 %v509
        %v958 = vunpack.c.l.b16 %v510
        %v959 = vunpack.c.l.b16 %v511
        %v960 = vunpack.c.l.b16 %v512
        %v961 = vunpack.c.l.b16 %v513
        %v962 = vunpack.c.l.b16 %v514
        %v963 = vunpack.c.l.b16 %v515
        %v964 = vunpack.c.l.b16 %v516
        %v965 = vunpack.c.l.b16 %v517
        %v966 = vpack.c.b16 %v903, %v902
        %v967 = vpack.c.b16 %v905, %v904
        %v968 = vpack.c.b16 %v907, %v906
        %v969 = vpack.c.b16 %v909, %v908
        %v970 = vpack.c.b16 %v911, %v910
        %v971 = vpack.c.b16 %v913, %v912
        %v972 = vpack.c.b16 %v915, %v914
        %v973 = vpack.c.b16 %v917, %v916
        %v974 = vpack.c.b16 %v919, %v918
        %v975 = vpack.c.b16 %v921, %v920
        %v976 = vpack.c.b16 %v923, %v922
        %v977 = vpack.c.b16 %v925, %v924
        %v978 = vpack.c.b16 %v927, %v926
        %v979 = vpack.c.b16 %v929, %v928
        %v980 = vpack.c.b16 %v931, %v930
        %v981 = vpack.c.b16 %v933, %v932
        %v982 = vpack.c.b16 %v935, %v934
        %v983 = vpack.c.b16 %v937, %v936
        %v984 = vpack.c.b16 %v939, %v938
        %v985 = vpack.c.b16 %v941, %v940
        %v986 = vpack.c.b16 %v943, %v942
        %v987 = vpack.c.b16 %v945, %v944
        %v988 = vpack.c.b16 %v947, %v946
        %v989 = vpack.c.b16 %v949, %v948
        %v990 = vpack.c.b16 %v951, %v950
        %v991 = vpack.c.b16 %v953, %v952
        %v992 = vpack.c.b16 %v955, %v954
        %v993 = vpack.c.b16 %v957, %v956
        %v994 = vpack.c.b16 %v959, %v958
        %v995 = vpack.c.b16 %v961, %v960
        %v996 = vpack.c.b16 %v963, %v962
        %v997 = vpack.c.b16 %v965, %v964
        %1030 = vmatprep.subr.bf16.mxu0 0
        %1031 = vmatpush1.bf16.msra.mxu0 %v973
        %1032 = vmatprep.subr.bf16.mxu0 0
        %1033 = vmatpush1.bf16.msra.mxu0 %v972
        %1034 = vmatprep.subr.bf16.mxu0 0
        %1035 = vmatpush1.bf16.msra.mxu0 %v971
        %1036 = vmatprep.subr.bf16.mxu0 0
        %1037 = vmatpush1.bf16.msra.mxu0 %v970
        %1038 = vmatprep.subr.bf16.mxu0 0
        %1039 = vmatpush1.bf16.msra.mxu0 %v969
        %1040 = vmatprep.subr.bf16.mxu0 0
        %1041 = vmatpush1.bf16.msra.mxu0 %v968
        %1042 = vmatprep.subr.bf16.mxu0 0
        %1043 = vmatpush1.bf16.msra.mxu0 %v967
        %1044 = vmatprep.subr.bf16.mxu0 0
        %1045 = vmatpush1.bf16.msra.mxu0 %v966
        %1046 = vmatprep.subr.bf16.mxu0 0
        %1047 = vmatpush2.bf16.msra.mxu0 %v981
        %1048 = vmatprep.subr.bf16.mxu0 0
        %1049 = vmatpush2.bf16.msra.mxu0 %v980
        %1050 = vmatprep.subr.bf16.mxu0 0
        %1051 = vmatpush2.bf16.msra.mxu0 %v979
        %1052 = vmatprep.subr.bf16.mxu0 0
        %1053 = vmatpush2.bf16.msra.mxu0 %v978
        %1054 = vmatprep.subr.bf16.mxu0 0
        %1055 = vmatpush2.bf16.msra.mxu0 %v977
        %1056 = vmatprep.subr.bf16.mxu0 0
        %1057 = vmatpush2.bf16.msra.mxu0 %v976
        %1058 = vmatprep.subr.bf16.mxu0 0
        %1059 = vmatpush2.bf16.msra.mxu0 %v975
        %1060 = vmatprep.subr.bf16.mxu0 0
        %1061 = vmatpush2.bf16.msra.mxu0 %v974
        %1062 = vmatprep.mubr.bf16.mxu0 %v711
        %1063 = vmatmul.mubr.bf16.gmra.mxu0 %v710
        %v1064 = vpop.f32.mrf.mxu0
        %v1065 = vadd.f32 0.0, %v1064
        %v1066 = vpop.f32.mrf.mxu0
        %v1067 = vpop.f32.mrf.mxu0
        %v1068 = vadd.f32 0.0, %v1067
        %v1069 = vpop.f32.mrf.mxu0
        %1070 = vmatprep.mubr.bf16.mxu0 %v715
        %1071 = vmatmul.mubr.bf16.gmra.mxu0 %v714
        %v1072 = vpop.f32.mrf.mxu0
        %v1073 = vadd.f32 0.0, %v1072
        %v1074 = vpop.f32.mrf.mxu0
        %v1075 = vpop.f32.mrf.mxu0
        %v1076 = vadd.f32 0.0, %v1075
        %v1077 = vpop.f32.mrf.mxu0
        %1078 = vmatprep.mubr.bf16.mxu0 %v719
        %1079 = vmatmul.mubr.bf16.gmra.mxu0 %v718
        %v1080 = vpop.f32.mrf.mxu0
        %v1081 = vadd.f32 0.0, %v1080
        %v1082 = vpop.f32.mrf.mxu0
        %v1083 = vpop.f32.mrf.mxu0
        %v1084 = vadd.f32 0.0, %v1083
        %v1085 = vpop.f32.mrf.mxu0
        %1086 = vmatprep.mubr.bf16.mxu0 %v723
        %1087 = vmatmul.mubr.bf16.gmra.mxu0 %v722
        %v1088 = vpop.f32.mrf.mxu0
        %v1089 = vadd.f32 0.0, %v1088
        %v1090 = vpop.f32.mrf.mxu0
        %v1091 = vpop.f32.mrf.mxu0
        %v1092 = vadd.f32 0.0, %v1091
        %v1093 = vpop.f32.mrf.mxu0
        %1094 = vmatprep.mubr.bf16.mxu0 %v727
        %1095 = vmatmul.mubr.bf16.gmra.mxu0 %v726
        %v1096 = vpop.f32.mrf.mxu0
        %v1097 = vadd.f32 0.0, %v1096
        %v1098 = vpop.f32.mrf.mxu0
        %v1099 = vpop.f32.mrf.mxu0
        %v1100 = vadd.f32 0.0, %v1099
        %v1101 = vpop.f32.mrf.mxu0
        %1102 = vmatprep.mubr.bf16.mxu0 %v731
        %1103 = vmatmul.mubr.bf16.gmra.mxu0 %v730
        %v1104 = vpop.f32.mrf.mxu0
        %v1105 = vadd.f32 0.0, %v1104
        %v1106 = vpop.f32.mrf.mxu0
        %v1107 = vpop.f32.mrf.mxu0
        %v1108 = vadd.f32 0.0, %v1107
        %v1109 = vpop.f32.mrf.mxu0
        %1110 = vmatprep.mubr.bf16.mxu0 %v735
        %1111 = vmatmul.mubr.bf16.gmra.mxu0 %v734
        %v1112 = vpop.f32.mrf.mxu0
        %v1113 = vadd.f32 0.0, %v1112
        %v1114 = vpop.f32.mrf.mxu0
        %v1115 = vpop.f32.mrf.mxu0
        %v1116 = vadd.f32 0.0, %v1115
        %v1117 = vpop.f32.mrf.mxu0
        %1118 = vmatprep.mubr.bf16.mxu0 %v739
        %1119 = vmatmul.mubr.bf16.gmra.mxu0 %v738
        %v1120 = vpop.f32.mrf.mxu0
        %v1121 = vadd.f32 0.0, %v1120
        %v1122 = vpop.f32.mrf.mxu0
        %v1123 = vpop.f32.mrf.mxu0
        %v1124 = vadd.f32 0.0, %v1123
        %v1125 = vpop.f32.mrf.mxu0
        %1126 = vmatprep.mubr.bf16.mxu0 %v743
        %1127 = vmatmul.mubr.bf16.gmra.mxu0 %v742
        %v1128 = vpop.f32.mrf.mxu0
        %v1129 = vadd.f32 0.0, %v1128
        %v1130 = vpop.f32.mrf.mxu0
        %v1131 = vpop.f32.mrf.mxu0
        %v1132 = vadd.f32 0.0, %v1131
        %v1133 = vpop.f32.mrf.mxu0
        %1134 = vmatprep.mubr.bf16.mxu0 %v747
        %1135 = vmatmul.mubr.bf16.gmra.mxu0 %v746
        %v1136 = vpop.f32.mrf.mxu0
        %v1137 = vadd.f32 0.0, %v1136
        %v1138 = vpop.f32.mrf.mxu0
        %v1139 = vpop.f32.mrf.mxu0
        %v1140 = vadd.f32 0.0, %v1139
        %v1141 = vpop.f32.mrf.mxu0
        %1142 = vmatprep.mubr.bf16.mxu0 %v751
        %1143 = vmatmul.mubr.bf16.gmra.mxu0 %v750
        %v1144 = vpop.f32.mrf.mxu0
        %v1145 = vadd.f32 0.0, %v1144
        %v1146 = vpop.f32.mrf.mxu0
        %v1147 = vpop.f32.mrf.mxu0
        %v1148 = vadd.f32 0.0, %v1147
        %v1149 = vpop.f32.mrf.mxu0
        %1150 = vmatprep.mubr.bf16.mxu0 %v755
        %1151 = vmatmul.mubr.bf16.gmra.mxu0 %v754
        %v1152 = vpop.f32.mrf.mxu0
        %v1153 = vadd.f32 0.0, %v1152
        %v1154 = vpop.f32.mrf.mxu0
        %v1155 = vpop.f32.mrf.mxu0
        %v1156 = vadd.f32 0.0, %v1155
        %v1157 = vpop.f32.mrf.mxu0
        %1158 = vmatprep.mubr.bf16.mxu0 %v759
        %1159 = vmatmul.mubr.bf16.gmra.mxu0 %v758
        %v1160 = vpop.f32.mrf.mxu0
        %v1161 = vadd.f32 0.0, %v1160
        %v1162 = vpop.f32.mrf.mxu0
        %v1163 = vpop.f32.mrf.mxu0
        %v1164 = vadd.f32 0.0, %v1163
        %v1165 = vpop.f32.mrf.mxu0
        %1166 = vmatprep.mubr.bf16.mxu0 %v763
        %1167 = vmatmul.mubr.bf16.gmra.mxu0 %v762
        %v1168 = vpop.f32.mrf.mxu0
        %v1169 = vadd.f32 0.0, %v1168
        %v1170 = vpop.f32.mrf.mxu0
        %v1171 = vpop.f32.mrf.mxu0
        %v1172 = vadd.f32 0.0, %v1171
        %v1173 = vpop.f32.mrf.mxu0
        %1174 = vmatprep.mubr.bf16.mxu0 %v767
        %1175 = vmatmul.mubr.bf16.gmra.mxu0 %v766
        %v1176 = vpop.f32.mrf.mxu0
        %v1177 = vadd.f32 0.0, %v1176
        %v1178 = vpop.f32.mrf.mxu0
        %v1179 = vpop.f32.mrf.mxu0
        %v1180 = vadd.f32 0.0, %v1179
        %v1181 = vpop.f32.mrf.mxu0
        %1182 = vmatprep.mubr.bf16.mxu0 %v771
        %1183 = vmatmul.mubr.bf16.gmra.mxu0 %v770
        %v1184 = vpop.f32.mrf.mxu0
        %v1185 = vadd.f32 0.0, %v1184
        %v1186 = vpop.f32.mrf.mxu0
        %v1187 = vpop.f32.mrf.mxu0
        %v1188 = vadd.f32 0.0, %v1187
        %v1189 = vpop.f32.mrf.mxu0
        %1190 = vdwg.mxu0
        %1191 = vmatprep.subr.bf16.mxu0 0
        %1192 = vmatpush1.bf16.msra.mxu0 %v989
        %1193 = vmatprep.subr.bf16.mxu0 0
        %1194 = vmatpush1.bf16.msra.mxu0 %v988
        %1195 = vmatprep.subr.bf16.mxu0 0
        %1196 = vmatpush1.bf16.msra.mxu0 %v987
        %1197 = vmatprep.subr.bf16.mxu0 0
        %1198 = vmatpush1.bf16.msra.mxu0 %v986
        %1199 = vmatprep.subr.bf16.mxu0 0
        %1200 = vmatpush1.bf16.msra.mxu0 %v985
        %1201 = vmatprep.subr.bf16.mxu0 0
        %1202 = vmatpush1.bf16.msra.mxu0 %v984
        %1203 = vmatprep.subr.bf16.mxu0 0
        %1204 = vmatpush1.bf16.msra.mxu0 %v983
        %1205 = vmatprep.subr.bf16.mxu0 0
        %1206 = vmatpush1.bf16.msra.mxu0 %v982
        %1207 = vmatprep.subr.bf16.mxu0 0
        %1208 = vmatpush2.bf16.msra.mxu0 %v997
        %1209 = vmatprep.subr.bf16.mxu0 0
        %1210 = vmatpush2.bf16.msra.mxu0 %v996
        %1211 = vmatprep.subr.bf16.mxu0 0
        %1212 = vmatpush2.bf16.msra.mxu0 %v995
        %1213 = vmatprep.subr.bf16.mxu0 0
        %1214 = vmatpush2.bf16.msra.mxu0 %v994
        %1215 = vmatprep.subr.bf16.mxu0 0
        %1216 = vmatpush2.bf16.msra.mxu0 %v993
        %1217 = vmatprep.subr.bf16.mxu0 0
        %1218 = vmatpush2.bf16.msra.mxu0 %v992
        %1219 = vmatprep.subr.bf16.mxu0 0
        %1220 = vmatpush2.bf16.msra.mxu0 %v991
        %1221 = vmatprep.subr.bf16.mxu0 0
        %1222 = vmatpush2.bf16.msra.mxu0 %v990
        %1223 = vmatprep.mubr.bf16.mxu0 %v713
        %1224 = vmatmul.mubr.bf16.gmra.mxu0 %v712
        %v1225 = vpop.f32.mrf.mxu0
        %v1226 = vadd.f32 %v1065, %v1225
        %v1227 = vpop.f32.mrf.mxu0
        %v1228 = vpop.f32.mrf.mxu0
        %v1229 = vadd.f32 %v1068, %v1228
        %v1230 = vpop.f32.mrf.mxu0
        %1231 = vmatprep.mubr.bf16.mxu0 %v717
        %1232 = vmatmul.mubr.bf16.gmra.mxu0 %v716
        %v1233 = vpop.f32.mrf.mxu0
        %v1234 = vadd.f32 %v1073, %v1233
        %v1235 = vpop.f32.mrf.mxu0
        %v1236 = vpop.f32.mrf.mxu0
        %v1237 = vadd.f32 %v1076, %v1236
        %v1238 = vpop.f32.mrf.mxu0
        %1239 = vmatprep.mubr.bf16.mxu0 %v721
        %1240 = vmatmul.mubr.bf16.gmra.mxu0 %v720
        %v1241 = vpop.f32.mrf.mxu0
        %v1242 = vadd.f32 %v1081, %v1241
        %v1243 = vpop.f32.mrf.mxu0
        %v1244 = vpop.f32.mrf.mxu0
        %v1245 = vadd.f32 %v1084, %v1244
        %v1246 = vpop.f32.mrf.mxu0
        %1247 = vmatprep.mubr.bf16.mxu0 %v725
        %1248 = vmatmul.mubr.bf16.gmra.mxu0 %v724
        %v1249 = vpop.f32.mrf.mxu0
        %v1250 = vadd.f32 %v1089, %v1249
        %v1251 = vpop.f32.mrf.mxu0
        %v1252 = vpop.f32.mrf.mxu0
        %v1253 = vadd.f32 %v1092, %v1252
        %v1254 = vpop.f32.mrf.mxu0
        %1255 = vmatprep.mubr.bf16.mxu0 %v729
        %1256 = vmatmul.mubr.bf16.gmra.mxu0 %v728
        %v1257 = vpop.f32.mrf.mxu0
        %v1258 = vadd.f32 %v1097, %v1257
        %v1259 = vpop.f32.mrf.mxu0
        %v1260 = vpop.f32.mrf.mxu0
        %v1261 = vadd.f32 %v1100, %v1260
        %v1262 = vpop.f32.mrf.mxu0
        %1263 = vmatprep.mubr.bf16.mxu0 %v733
        %1264 = vmatmul.mubr.bf16.gmra.mxu0 %v732
        %v1265 = vpop.f32.mrf.mxu0
        %v1266 = vadd.f32 %v1105, %v1265
        %v1267 = vpop.f32.mrf.mxu0
        %v1268 = vpop.f32.mrf.mxu0
        %v1269 = vadd.f32 %v1108, %v1268
        %v1270 = vpop.f32.mrf.mxu0
        %1271 = vmatprep.mubr.bf16.mxu0 %v737
        %1272 = vmatmul.mubr.bf16.gmra.mxu0 %v736
        %v1273 = vpop.f32.mrf.mxu0
        %v1274 = vadd.f32 %v1113, %v1273
        %v1275 = vpop.f32.mrf.mxu0
        %v1276 = vpop.f32.mrf.mxu0
        %v1277 = vadd.f32 %v1116, %v1276
        %v1278 = vpop.f32.mrf.mxu0
        %1279 = vmatprep.mubr.bf16.mxu0 %v741
        %1280 = vmatmul.mubr.bf16.gmra.mxu0 %v740
        %v1281 = vpop.f32.mrf.mxu0
        %v1282 = vadd.f32 %v1121, %v1281
        %v1283 = vpop.f32.mrf.mxu0
        %v1284 = vpop.f32.mrf.mxu0
        %v1285 = vadd.f32 %v1124, %v1284
        %v1286 = vpop.f32.mrf.mxu0
        %1287 = vmatprep.mubr.bf16.mxu0 %v745
        %1288 = vmatmul.mubr.bf16.gmra.mxu0 %v744
        %v1289 = vpop.f32.mrf.mxu0
        %v1290 = vadd.f32 %v1129, %v1289
        %v1291 = vpop.f32.mrf.mxu0
        %v1292 = vpop.f32.mrf.mxu0
        %v1293 = vadd.f32 %v1132, %v1292
        %v1294 = vpop.f32.mrf.mxu0
        %1295 = vmatprep.mubr.bf16.mxu0 %v749
        %1296 = vmatmul.mubr.bf16.gmra.mxu0 %v748
        %v1297 = vpop.f32.mrf.mxu0
        %v1298 = vadd.f32 %v1137, %v1297
        %v1299 = vpop.f32.mrf.mxu0
        %v1300 = vpop.f32.mrf.mxu0
        %v1301 = vadd.f32 %v1140, %v1300
        %v1302 = vpop.f32.mrf.mxu0
        %1303 = vmatprep.mubr.bf16.mxu0 %v753
        %1304 = vmatmul.mubr.bf16.gmra.mxu0 %v752
        %v1305 = vpop.f32.mrf.mxu0
        %v1306 = vadd.f32 %v1145, %v1305
        %v1307 = vpop.f32.mrf.mxu0
        %v1308 = vpop.f32.mrf.mxu0
        %v1309 = vadd.f32 %v1148, %v1308
        %v1310 = vpop.f32.mrf.mxu0
        %1311 = vmatprep.mubr.bf16.mxu0 %v757
        %1312 = vmatmul.mubr.bf16.gmra.mxu0 %v756
        %v1313 = vpop.f32.mrf.mxu0
        %v1314 = vadd.f32 %v1153, %v1313
        %v1315 = vpop.f32.mrf.mxu0
        %v1316 = vpop.f32.mrf.mxu0
        %v1317 = vadd.f32 %v1156, %v1316
        %v1318 = vpop.f32.mrf.mxu0
        %1319 = vmatprep.mubr.bf16.mxu0 %v761
        %1320 = vmatmul.mubr.bf16.gmra.mxu0 %v760
        %v1321 = vpop.f32.mrf.mxu0
        %v1322 = vadd.f32 %v1161, %v1321
        %v1323 = vpop.f32.mrf.mxu0
        %v1324 = vpop.f32.mrf.mxu0
        %v1325 = vadd.f32 %v1164, %v1324
        %v1326 = vpop.f32.mrf.mxu0
        %1327 = vmatprep.mubr.bf16.mxu0 %v765
        %1328 = vmatmul.mubr.bf16.gmra.mxu0 %v764
        %v1329 = vpop.f32.mrf.mxu0
        %v1330 = vadd.f32 %v1169, %v1329
        %v1331 = vpop.f32.mrf.mxu0
        %v1332 = vpop.f32.mrf.mxu0
        %v1333 = vadd.f32 %v1172, %v1332
        %v1334 = vpop.f32.mrf.mxu0
        %1335 = vmatprep.mubr.bf16.mxu0 %v769
        %1336 = vmatmul.mubr.bf16.gmra.mxu0 %v768
        %v1337 = vpop.f32.mrf.mxu0
        %v1338 = vadd.f32 %v1177, %v1337
        %v1339 = vpop.f32.mrf.mxu0
        %v1340 = vpop.f32.mrf.mxu0
        %v1341 = vadd.f32 %v1180, %v1340
        %v1342 = vpop.f32.mrf.mxu0
        %1343 = vmatprep.mubr.bf16.mxu0 %v773
        %1344 = vmatmul.mubr.bf16.gmra.mxu0 %v772
        %v1345 = vpop.f32.mrf.mxu0
        %v1346 = vadd.f32 %v1185, %v1345
        %v1347 = vpop.f32.mrf.mxu0
        %v1348 = vpop.f32.mrf.mxu0
        %v1349 = vadd.f32 %v1188, %v1348
        %v1350 = vpop.f32.mrf.mxu0
        %1351 = vdwg.mxu0
        %v1352 = vadd.f32 %v422, %v1226
        %v1353 = vadd.f32 %v423, %v1229
        %v1354 = vadd.f32 %v424, %v1234
        %v1355 = vadd.f32 %v425, %v1237
        %v1356 = vadd.f32 %v426, %v1242
        %v1357 = vadd.f32 %v427, %v1245
        %v1358 = vadd.f32 %v428, %v1250
        %v1359 = vadd.f32 %v429, %v1253
        %v1360 = vadd.f32 %v430, %v1258
        %v1361 = vadd.f32 %v431, %v1261
        %v1362 = vadd.f32 %v432, %v1266
        %v1363 = vadd.f32 %v433, %v1269
        %v1364 = vadd.f32 %v434, %v1274
        %v1365 = vadd.f32 %v435, %v1277
        %v1366 = vadd.f32 %v436, %v1282
        %v1367 = vadd.f32 %v437, %v1285
        %v1368 = vadd.f32 %v438, %v1290
        %v1369 = vadd.f32 %v439, %v1293
        %v1370 = vadd.f32 %v440, %v1298
        %v1371 = vadd.f32 %v441, %v1301
        %v1372 = vadd.f32 %v442, %v1306
        %v1373 = vadd.f32 %v443, %v1309
        %v1374 = vadd.f32 %v444, %v1314
        %v1375 = vadd.f32 %v445, %v1317
        %v1376 = vadd.f32 %v446, %v1322
        %v1377 = vadd.f32 %v447, %v1325
        %v1378 = vadd.f32 %v448, %v1330
        %v1379 = vadd.f32 %v449, %v1333
        %v1380 = vadd.f32 %v450, %v1338
        %v1381 = vadd.f32 %v451, %v1341
        %v1382 = vadd.f32 %v452, %v1346
        %v1383 = vadd.f32 %v453, %v1349
        %1384 = vst [vmem:[#allocation2] sm:$0xff] %v1352
        %1385 = vst [vmem:[#allocation2 + $0x8] sm:$0xff] %v1353
        %1386 = vst [vmem:[#allocation2 + $0x10] sm:$0xff] %v1354
        %1387 = vst [vmem:[#allocation2 + $0x18] sm:$0xff] %v1355
        %1388 = vst [vmem:[#allocation2 + $0x20] sm:$0xff] %v1356
        %1389 = vst [vmem:[#allocation2 + $0x28] sm:$0xff] %v1357
        %1390 = vst [vmem:[#allocation2 + $0x30] sm:$0xff] %v1358
        %1391 = vst [vmem:[#allocation2 + $0x38] sm:$0xff] %v1359
        %1392 = vst [vmem:[#allocation2 + $0x40] sm:$0xff] %v1360
        %1393 = vst [vmem:[#allocation2 + $0x48] sm:$0xff] %v1361
        %1394 = vst [vmem:[#allocation2 + $0x50] sm:$0xff] %v1362
        %1395 = vst [vmem:[#allocation2 + $0x58] sm:$0xff] %v1363
        %1396 = vst [vmem:[#allocation2 + $0x60] sm:$0xff] %v1364
        %1397 = vst [vmem:[#allocation2 + $0x68] sm:$0xff] %v1365
        %1398 = vst [vmem:[#allocation2 + $0x70] sm:$0xff] %v1366
        %1399 = vst [vmem:[#allocation2 + $0x78] sm:$0xff] %v1367
        %1400 = vst [vmem:[#allocation2 + $0x80] sm:$0xff] %v1368
        %1401 = vst [vmem:[#allocation2 + $0x88] sm:$0xff] %v1369
        %1402 = vst [vmem:[#allocation2 + $0x90] sm:$0xff] %v1370
        %1403 = vst [vmem:[#allocation2 + $0x98] sm:$0xff] %v1371
        %1404 = vst [vmem:[#allocation2 + $0xa0] sm:$0xff] %v1372
        %1405 = vst [vmem:[#allocation2 + $0xa8] sm:$0xff] %v1373
        %1406 = vst [vmem:[#allocation2 + $0xb0] sm:$0xff] %v1374
        %1407 = vst [vmem:[#allocation2 + $0xb8] sm:$0xff] %v1375
        %1408 = vst [vmem:[#allocation2 + $0xc0] sm:$0xff] %v1376
        %1409 = vst [vmem:[#allocation2 + $0xc8] sm:$0xff] %v1377
        %1410 = vst [vmem:[#allocation2 + $0xd0] sm:$0xff] %v1378
        %1411 = vst [vmem:[#allocation2 + $0xd8] sm:$0xff] %v1379
        %1412 = vst [vmem:[#allocation2 + $0xe0] sm:$0xff] %v1380
        %1413 = vst [vmem:[#allocation2 + $0xe8] sm:$0xff] %v1381
        %1414 = vst [vmem:[#allocation2 + $0xf0] sm:$0xff] %v1382
        %1415 = vst [vmem:[#allocation2 + $0xf8] sm:$0xff] %v1383
        %v1416 = vld [vmem:[#allocation3] sm:$0xff]
        %v1417 = vld [vmem:[#allocation3 + $0x8] sm:$0xff]
        %v1418 = vld [vmem:[#allocation3 + $0x10] sm:$0xff]
        %v1419 = vld [vmem:[#allocation3 + $0x18] sm:$0xff]
        %v1420 = vld [vmem:[#allocation3 + $0x20] sm:$0xff]
        %v1421 = vld [vmem:[#allocation3 + $0x28] sm:$0xff]
        %v1422 = vld [vmem:[#allocation3 + $0x30] sm:$0xff]
        %v1423 = vld [vmem:[#allocation3 + $0x38] sm:$0xff]
        %v1424 = vld [vmem:[#allocation3 + $0x40] sm:$0xff]
        %v1425 = vld [vmem:[#allocation3 + $0x48] sm:$0xff]
        %v1426 = vld [vmem:[#allocation3 + $0x50] sm:$0xff]
        %v1427 = vld [vmem:[#allocation3 + $0x58] sm:$0xff]
        %v1428 = vld [vmem:[#allocation3 + $0x60] sm:$0xff]
        %v1429 = vld [vmem:[#allocation3 + $0x68] sm:$0xff]
        %v1430 = vld [vmem:[#allocation3 + $0x70] sm:$0xff]
        %v1431 = vld [vmem:[#allocation3 + $0x78] sm:$0xff]
        %v1432 = vld [vmem:[#allocation3 + $0x80] sm:$0xff]
        %v1433 = vld [vmem:[#allocation3 + $0x88] sm:$0xff]
        %v1434 = vld [vmem:[#allocation3 + $0x90] sm:$0xff]
        %v1435 = vld [vmem:[#allocation3 + $0x98] sm:$0xff]
        %v1436 = vld [vmem:[#allocation3 + $0xa0] sm:$0xff]
        %v1437 = vld [vmem:[#allocation3 + $0xa8] sm:$0xff]
        %v1438 = vld [vmem:[#allocation3 + $0xb0] sm:$0xff]
        %v1439 = vld [vmem:[#allocation3 + $0xb8] sm:$0xff]
        %v1440 = vld [vmem:[#allocation3 + $0xc0] sm:$0xff]
        %v1441 = vld [vmem:[#allocation3 + $0xc8] sm:$0xff]
        %v1442 = vld [vmem:[#allocation3 + $0xd0] sm:$0xff]
        %v1443 = vld [vmem:[#allocation3 + $0xd8] sm:$0xff]
        %v1444 = vld [vmem:[#allocation3 + $0xe0] sm:$0xff]
        %v1445 = vld [vmem:[#allocation3 + $0xe8] sm:$0xff]
        %v1446 = vld [vmem:[#allocation3 + $0xf0] sm:$0xff]
        %v1447 = vld [vmem:[#allocation3 + $0xf8] sm:$0xff]
        %v1448 = vunpack.c.l.bf16 %v358
        %v1449 = vunpack.c.h.bf16 %v358
        %v1450 = vunpack.c.l.bf16 %v359
        %v1451 = vunpack.c.h.bf16 %v359
        %v1452 = vunpack.c.l.bf16 %v360
        %v1453 = vunpack.c.h.bf16 %v360
        %v1454 = vunpack.c.l.bf16 %v361
        %v1455 = vunpack.c.h.bf16 %v361
        %v1456 = vunpack.c.l.bf16 %v362
        %v1457 = vunpack.c.h.bf16 %v362
        %v1458 = vunpack.c.l.bf16 %v363
        %v1459 = vunpack.c.h.bf16 %v363
        %v1460 = vunpack.c.l.bf16 %v364
        %v1461 = vunpack.c.h.bf16 %v364
        %v1462 = vunpack.c.l.bf16 %v365
        %v1463 = vunpack.c.h.bf16 %v365
        %v1464 = vunpack.c.l.bf16 %v366
        %v1465 = vunpack.c.h.bf16 %v366
        %v1466 = vunpack.c.l.bf16 %v367
        %v1467 = vunpack.c.h.bf16 %v367
        %v1468 = vunpack.c.l.bf16 %v368
        %v1469 = vunpack.c.h.bf16 %v368
        %v1470 = vunpack.c.l.bf16 %v369
        %v1471 = vunpack.c.h.bf16 %v369
        %v1472 = vunpack.c.l.bf16 %v370
        %v1473 = vunpack.c.h.bf16 %v370
        %v1474 = vunpack.c.l.bf16 %v371
        %v1475 = vunpack.c.h.bf16 %v371
        %v1476 = vunpack.c.l.bf16 %v372
        %v1477 = vunpack.c.h.bf16 %v372
        %v1478 = vunpack.c.l.bf16 %v373
        %v1479 = vunpack.c.h.bf16 %v373
        %v1480 = vunpack.c.l.bf16 %v374
        %v1481 = vunpack.c.h.bf16 %v374
        %v1482 = vunpack.c.l.bf16 %v375
        %v1483 = vunpack.c.h.bf16 %v375
        %v1484 = vunpack.c.l.bf16 %v376
        %v1485 = vunpack.c.h.bf16 %v376
        %v1486 = vunpack.c.l.bf16 %v377
        %v1487 = vunpack.c.h.bf16 %v377
        %v1488 = vunpack.c.l.bf16 %v378
        %v1489 = vunpack.c.h.bf16 %v378
        %v1490 = vunpack.c.l.bf16 %v379
        %v1491 = vunpack.c.h.bf16 %v379
        %v1492 = vunpack.c.l.bf16 %v380
        %v1493 = vunpack.c.h.bf16 %v380
        %v1494 = vunpack.c.l.bf16 %v381
        %v1495 = vunpack.c.h.bf16 %v381
        %v1496 = vunpack.c.l.bf16 %v382
        %v1497 = vunpack.c.h.bf16 %v382
        %v1498 = vunpack.c.l.bf16 %v383
        %v1499 = vunpack.c.h.bf16 %v383
        %v1500 = vunpack.c.l.bf16 %v384
        %v1501 = vunpack.c.h.bf16 %v384
        %v1502 = vunpack.c.l.bf16 %v385
        %v1503 = vunpack.c.h.bf16 %v385
        %v1504 = vunpack.c.l.bf16 %v386
        %v1505 = vunpack.c.h.bf16 %v386
        %v1506 = vunpack.c.l.bf16 %v387
        %v1507 = vunpack.c.h.bf16 %v387
        %v1508 = vunpack.c.l.bf16 %v388
        %v1509 = vunpack.c.h.bf16 %v388
        %v1510 = vunpack.c.l.bf16 %v389
        %v1511 = vunpack.c.h.bf16 %v389
        %v1512 = vunpack.c.l.bf16 %v390
        %v1513 = vunpack.c.h.bf16 %v390
        %v1514 = vunpack.c.l.bf16 %v391
        %v1515 = vunpack.c.h.bf16 %v391
        %v1516 = vunpack.c.l.bf16 %v392
        %v1517 = vunpack.c.h.bf16 %v392
        %v1518 = vunpack.c.l.bf16 %v393
        %v1519 = vunpack.c.h.bf16 %v393
        %v1520 = vunpack.c.l.bf16 %v394
        %v1521 = vunpack.c.h.bf16 %v394
        %v1522 = vunpack.c.l.bf16 %v395
        %v1523 = vunpack.c.h.bf16 %v395
        %v1524 = vunpack.c.l.bf16 %v396
        %v1525 = vunpack.c.h.bf16 %v396
        %v1526 = vunpack.c.l.bf16 %v397
        %v1527 = vunpack.c.h.bf16 %v397
        %v1528 = vunpack.c.l.bf16 %v398
        %v1529 = vunpack.c.h.bf16 %v398
        %v1530 = vunpack.c.l.bf16 %v399
        %v1531 = vunpack.c.h.bf16 %v399
        %v1532 = vunpack.c.l.bf16 %v400
        %v1533 = vunpack.c.h.bf16 %v400
        %v1534 = vunpack.c.l.bf16 %v401
        %v1535 = vunpack.c.h.bf16 %v401
        %v1536 = vunpack.c.l.bf16 %v402
        %v1537 = vunpack.c.h.bf16 %v402
        %v1538 = vunpack.c.l.bf16 %v403
        %v1539 = vunpack.c.h.bf16 %v403
        %v1540 = vunpack.c.l.bf16 %v404
        %v1541 = vunpack.c.h.bf16 %v404
        %v1542 = vunpack.c.l.bf16 %v405
        %v1543 = vunpack.c.h.bf16 %v405
        %v1544 = vunpack.c.l.bf16 %v406
        %v1545 = vunpack.c.h.bf16 %v406
        %v1546 = vunpack.c.l.bf16 %v407
        %v1547 = vunpack.c.h.bf16 %v407
        %v1548 = vunpack.c.l.bf16 %v408
        %v1549 = vunpack.c.h.bf16 %v408
        %v1550 = vunpack.c.l.bf16 %v409
        %v1551 = vunpack.c.h.bf16 %v409
        %v1552 = vunpack.c.l.bf16 %v410
        %v1553 = vunpack.c.h.bf16 %v410
        %v1554 = vunpack.c.l.bf16 %v411
        %v1555 = vunpack.c.h.bf16 %v411
        %v1556 = vunpack.c.l.bf16 %v412
        %v1557 = vunpack.c.h.bf16 %v412
        %v1558 = vunpack.c.l.bf16 %v413
        %v1559 = vunpack.c.h.bf16 %v413
        %v1560 = vunpack.c.l.bf16 %v414
        %v1561 = vunpack.c.h.bf16 %v414
        %v1562 = vunpack.c.l.bf16 %v415
        %v1563 = vunpack.c.h.bf16 %v415
        %v1564 = vunpack.c.l.bf16 %v416
        %v1565 = vunpack.c.h.bf16 %v416
        %v1566 = vunpack.c.l.bf16 %v417
        %v1567 = vunpack.c.h.bf16 %v417
        %v1568 = vunpack.c.l.bf16 %v418
        %v1569 = vunpack.c.h.bf16 %v418
        %v1570 = vunpack.c.l.bf16 %v419
        %v1571 = vunpack.c.h.bf16 %v419
        %v1572 = vunpack.c.l.bf16 %v420
        %v1573 = vunpack.c.h.bf16 %v420
        %v1574 = vunpack.c.l.bf16 %v421
        %v1575 = vunpack.c.h.bf16 %v421
        %v1576 = vadd.f32 %v1448, %v1449
        %v1577 = vadd.f32 %v1576, %v1450
        %v1578 = vadd.f32 %v1577, %v1451
        %1579 = vadd.xlane.f32.xlu0 %v1578
        %v1580 = vpop.xlane.xlu0 %1579
        %v1581 = vadd.f32 %v1452, %v1453
        %v1582 = vadd.f32 %v1581, %v1454
        %v1583 = vadd.f32 %v1582, %v1455
        %1584 = vadd.xlane.f32.xlu0 %v1583
        %v1585 = vpop.xlane.xlu0 %1584
        %v1586 = vadd.f32 %v1456, %v1457
        %v1587 = vadd.f32 %v1586, %v1458
        %v1588 = vadd.f32 %v1587, %v1459
        %1589 = vadd.xlane.f32.xlu0 %v1588
        %v1590 = vpop.xlane.xlu0 %1589
        %v1591 = vadd.f32 %v1460, %v1461
        %v1592 = vadd.f32 %v1591, %v1462
        %v1593 = vadd.f32 %v1592, %v1463
        %1594 = vadd.xlane.f32.xlu0 %v1593
        %v1595 = vpop.xlane.xlu0 %1594
        %v1596 = vadd.f32 %v1464, %v1465
        %v1597 = vadd.f32 %v1596, %v1466
        %v1598 = vadd.f32 %v1597, %v1467
        %1599 = vadd.xlane.f32.xlu0 %v1598
        %v1600 = vpop.xlane.xlu0 %1599
        %v1601 = vadd.f32 %v1468, %v1469
        %v1602 = vadd.f32 %v1601, %v1470
        %v1603 = vadd.f32 %v1602, %v1471
        %1604 = vadd.xlane.f32.xlu0 %v1603
        %v1605 = vpop.xlane.xlu0 %1604
        %v1606 = vadd.f32 %v1472, %v1473
        %v1607 = vadd.f32 %v1606, %v1474
        %v1608 = vadd.f32 %v1607, %v1475
        %1609 = vadd.xlane.f32.xlu0 %v1608
        %v1610 = vpop.xlane.xlu0 %1609
        %v1611 = vadd.f32 %v1476, %v1477
        %v1612 = vadd.f32 %v1611, %v1478
        %v1613 = vadd.f32 %v1612, %v1479
        %1614 = vadd.xlane.f32.xlu0 %v1613
        %v1615 = vpop.xlane.xlu0 %1614
        %v1616 = vadd.f32 %v1480, %v1481
        %v1617 = vadd.f32 %v1616, %v1482
        %v1618 = vadd.f32 %v1617, %v1483
        %1619 = vadd.xlane.f32.xlu0 %v1618
        %v1620 = vpop.xlane.xlu0 %1619
        %v1621 = vadd.f32 %v1484, %v1485
        %v1622 = vadd.f32 %v1621, %v1486
        %v1623 = vadd.f32 %v1622, %v1487
        %1624 = vadd.xlane.f32.xlu0 %v1623
        %v1625 = vpop.xlane.xlu0 %1624
        %v1626 = vadd.f32 %v1488, %v1489
        %v1627 = vadd.f32 %v1626, %v1490
        %v1628 = vadd.f32 %v1627, %v1491
        %1629 = vadd.xlane.f32.xlu0 %v1628
        %v1630 = vpop.xlane.xlu0 %1629
        %v1631 = vadd.f32 %v1492, %v1493
        %v1632 = vadd.f32 %v1631, %v1494
        %v1633 = vadd.f32 %v1632, %v1495
        %1634 = vadd.xlane.f32.xlu0 %v1633
        %v1635 = vpop.xlane.xlu0 %1634
        %v1636 = vadd.f32 %v1496, %v1497
        %v1637 = vadd.f32 %v1636, %v1498
        %v1638 = vadd.f32 %v1637, %v1499
        %1639 = vadd.xlane.f32.xlu0 %v1638
        %v1640 = vpop.xlane.xlu0 %1639
        %v1641 = vadd.f32 %v1500, %v1501
        %v1642 = vadd.f32 %v1641, %v1502
        %v1643 = vadd.f32 %v1642, %v1503
        %1644 = vadd.xlane.f32.xlu0 %v1643
        %v1645 = vpop.xlane.xlu0 %1644
        %v1646 = vadd.f32 %v1504, %v1505
        %v1647 = vadd.f32 %v1646, %v1506
        %v1648 = vadd.f32 %v1647, %v1507
        %1649 = vadd.xlane.f32.xlu0 %v1648
        %v1650 = vpop.xlane.xlu0 %1649
        %v1651 = vadd.f32 %v1508, %v1509
        %v1652 = vadd.f32 %v1651, %v1510
        %v1653 = vadd.f32 %v1652, %v1511
        %1654 = vadd.xlane.f32.xlu0 %v1653
        %v1655 = vpop.xlane.xlu0 %1654
        %v1656 = vadd.f32 %v1512, %v1513
        %v1657 = vadd.f32 %v1656, %v1514
        %v1658 = vadd.f32 %v1657, %v1515
        %1659 = vadd.xlane.f32.xlu0 %v1658
        %v1660 = vpop.xlane.xlu0 %1659
        %v1661 = vadd.f32 %v1516, %v1517
        %v1662 = vadd.f32 %v1661, %v1518
        %v1663 = vadd.f32 %v1662, %v1519
        %1664 = vadd.xlane.f32.xlu0 %v1663
        %v1665 = vpop.xlane.xlu0 %1664
        %v1666 = vadd.f32 %v1520, %v1521
        %v1667 = vadd.f32 %v1666, %v1522
        %v1668 = vadd.f32 %v1667, %v1523
        %1669 = vadd.xlane.f32.xlu0 %v1668
        %v1670 = vpop.xlane.xlu0 %1669
        %v1671 = vadd.f32 %v1524, %v1525
        %v1672 = vadd.f32 %v1671, %v1526
        %v1673 = vadd.f32 %v1672, %v1527
        %1674 = vadd.xlane.f32.xlu0 %v1673
        %v1675 = vpop.xlane.xlu0 %1674
        %v1676 = vadd.f32 %v1528, %v1529
        %v1677 = vadd.f32 %v1676, %v1530
        %v1678 = vadd.f32 %v1677, %v1531
        %1679 = vadd.xlane.f32.xlu0 %v1678
        %v1680 = vpop.xlane.xlu0 %1679
        %v1681 = vadd.f32 %v1532, %v1533
        %v1682 = vadd.f32 %v1681, %v1534
        %v1683 = vadd.f32 %v1682, %v1535
        %1684 = vadd.xlane.f32.xlu0 %v1683
        %v1685 = vpop.xlane.xlu0 %1684
        %v1686 = vadd.f32 %v1536, %v1537
        %v1687 = vadd.f32 %v1686, %v1538
        %v1688 = vadd.f32 %v1687, %v1539
        %1689 = vadd.xlane.f32.xlu0 %v1688
        %v1690 = vpop.xlane.xlu0 %1689
        %v1691 = vadd.f32 %v1540, %v1541
        %v1692 = vadd.f32 %v1691, %v1542
        %v1693 = vadd.f32 %v1692, %v1543
        %1694 = vadd.xlane.f32.xlu0 %v1693
        %v1695 = vpop.xlane.xlu0 %1694
        %v1696 = vadd.f32 %v1544, %v1545
        %v1697 = vadd.f32 %v1696, %v1546
        %v1698 = vadd.f32 %v1697, %v1547
        %1699 = vadd.xlane.f32.xlu0 %v1698
        %v1700 = vpop.xlane.xlu0 %1699
        %v1701 = vadd.f32 %v1548, %v1549
        %v1702 = vadd.f32 %v1701, %v1550
        %v1703 = vadd.f32 %v1702, %v1551
        %1704 = vadd.xlane.f32.xlu0 %v1703
        %v1705 = vpop.xlane.xlu0 %1704
        %v1706 = vadd.f32 %v1552, %v1553
        %v1707 = vadd.f32 %v1706, %v1554
        %v1708 = vadd.f32 %v1707, %v1555
        %1709 = vadd.xlane.f32.xlu0 %v1708
        %v1710 = vpop.xlane.xlu0 %1709
        %v1711 = vadd.f32 %v1556, %v1557
        %v1712 = vadd.f32 %v1711, %v1558
        %v1713 = vadd.f32 %v1712, %v1559
        %1714 = vadd.xlane.f32.xlu0 %v1713
        %v1715 = vpop.xlane.xlu0 %1714
        %v1716 = vadd.f32 %v1560, %v1561
        %v1717 = vadd.f32 %v1716, %v1562
        %v1718 = vadd.f32 %v1717, %v1563
        %1719 = vadd.xlane.f32.xlu0 %v1718
        %v1720 = vpop.xlane.xlu0 %1719
        %v1721 = vadd.f32 %v1564, %v1565
        %v1722 = vadd.f32 %v1721, %v1566
        %v1723 = vadd.f32 %v1722, %v1567
        %1724 = vadd.xlane.f32.xlu0 %v1723
        %v1725 = vpop.xlane.xlu0 %1724
        %v1726 = vadd.f32 %v1568, %v1569
        %v1727 = vadd.f32 %v1726, %v1570
        %v1728 = vadd.f32 %v1727, %v1571
        %1729 = vadd.xlane.f32.xlu0 %v1728
        %v1730 = vpop.xlane.xlu0 %1729
        %v1731 = vadd.f32 %v1572, %v1573
        %v1732 = vadd.f32 %v1731, %v1574
        %v1733 = vadd.f32 %v1732, %v1575
        %1734 = vadd.xlane.f32.xlu0 %v1733
        %v1735 = vpop.xlane.xlu0 %1734
        %v1736 = vadd.f32 %v1416, %v1580
        %v1737 = vadd.f32 %v1417, %v1585
        %v1738 = vadd.f32 %v1418, %v1590
        %v1739 = vadd.f32 %v1419, %v1595
        %v1740 = vadd.f32 %v1420, %v1600
        %v1741 = vadd.f32 %v1421, %v1605
        %v1742 = vadd.f32 %v1422, %v1610
        %v1743 = vadd.f32 %v1423, %v1615
        %v1744 = vadd.f32 %v1424, %v1620
        %v1745 = vadd.f32 %v1425, %v1625
        %v1746 = vadd.f32 %v1426, %v1630
        %v1747 = vadd.f32 %v1427, %v1635
        %v1748 = vadd.f32 %v1428, %v1640
        %v1749 = vadd.f32 %v1429, %v1645
        %v1750 = vadd.f32 %v1430, %v1650
        %v1751 = vadd.f32 %v1431, %v1655
        %v1752 = vadd.f32 %v1432, %v1660
        %v1753 = vadd.f32 %v1433, %v1665
        %v1754 = vadd.f32 %v1434, %v1670
        %v1755 = vadd.f32 %v1435, %v1675
        %v1756 = vadd.f32 %v1436, %v1680
        %v1757 = vadd.f32 %v1437, %v1685
        %v1758 = vadd.f32 %v1438, %v1690
        %v1759 = vadd.f32 %v1439, %v1695
        %v1760 = vadd.f32 %v1440, %v1700
        %v1761 = vadd.f32 %v1441, %v1705
        %v1762 = vadd.f32 %v1442, %v1710
        %v1763 = vadd.f32 %v1443, %v1715
        %v1764 = vadd.f32 %v1444, %v1720
        %v1765 = vadd.f32 %v1445, %v1725
        %v1766 = vadd.f32 %v1446, %v1730
        %v1767 = vadd.f32 %v1447, %v1735
        %vm1768 = vcmask 7168
        %1769 = vst.msk [vmem:[#allocation3] sm:$0xff] %vm1768, %v1736
        %1770 = vst.msk [vmem:[#allocation3 + $0x8] sm:$0xff] %vm1768, %v1737
        %1771 = vst.msk [vmem:[#allocation3 + $0x10] sm:$0xff] %vm1768, %v1738
        %1772 = vst.msk [vmem:[#allocation3 + $0x18] sm:$0xff] %vm1768, %v1739
        %1773 = vst.msk [vmem:[#allocation3 + $0x20] sm:$0xff] %vm1768, %v1740
        %1774 = vst.msk [vmem:[#allocation3 + $0x28] sm:$0xff] %vm1768, %v1741
        %1775 = vst.msk [vmem:[#allocation3 + $0x30] sm:$0xff] %vm1768, %v1742
        %1776 = vst.msk [vmem:[#allocation3 + $0x38] sm:$0xff] %vm1768, %v1743
        %1777 = vst.msk [vmem:[#allocation3 + $0x40] sm:$0xff] %vm1768, %v1744
        %1778 = vst.msk [vmem:[#allocation3 + $0x48] sm:$0xff] %vm1768, %v1745
        %1779 = vst.msk [vmem:[#allocation3 + $0x50] sm:$0xff] %vm1768, %v1746
        %1780 = vst.msk [vmem:[#allocation3 + $0x58] sm:$0xff] %vm1768, %v1747
        %1781 = vst.msk [vmem:[#allocation3 + $0x60] sm:$0xff] %vm1768, %v1748
        %1782 = vst.msk [vmem:[#allocation3 + $0x68] sm:$0xff] %vm1768, %v1749
        %1783 = vst.msk [vmem:[#allocation3 + $0x70] sm:$0xff] %vm1768, %v1750
        %1784 = vst.msk [vmem:[#allocation3 + $0x78] sm:$0xff] %vm1768, %v1751
        %1785 = vst.msk [vmem:[#allocation3 + $0x80] sm:$0xff] %vm1768, %v1752
        %1786 = vst.msk [vmem:[#allocation3 + $0x88] sm:$0xff] %vm1768, %v1753
        %1787 = vst.msk [vmem:[#allocation3 + $0x90] sm:$0xff] %vm1768, %v1754
        %1788 = vst.msk [vmem:[#allocation3 + $0x98] sm:$0xff] %vm1768, %v1755
        %1789 = vst.msk [vmem:[#allocation3 + $0xa0] sm:$0xff] %vm1768, %v1756
        %1790 = vst.msk [vmem:[#allocation3 + $0xa8] sm:$0xff] %vm1768, %v1757
        %1791 = vst.msk [vmem:[#allocation3 + $0xb0] sm:$0xff] %vm1768, %v1758
        %1792 = vst.msk [vmem:[#allocation3 + $0xb8] sm:$0xff] %vm1768, %v1759
        %1793 = vst.msk [vmem:[#allocation3 + $0xc0] sm:$0xff] %vm1768, %v1760
        %1794 = vst.msk [vmem:[#allocation3 + $0xc8] sm:$0xff] %vm1768, %v1761
        %1795 = vst.msk [vmem:[#allocation3 + $0xd0] sm:$0xff] %vm1768, %v1762
        %1796 = vst.msk [vmem:[#allocation3 + $0xd8] sm:$0xff] %vm1768, %v1763
        %1797 = vst.msk [vmem:[#allocation3 + $0xe0] sm:$0xff] %vm1768, %v1764
        %1798 = vst.msk [vmem:[#allocation3 + $0xe8] sm:$0xff] %vm1768, %v1765
        %1799 = vst.msk [vmem:[#allocation3 + $0xf0] sm:$0xff] %vm1768, %v1766
        %1800 = vst.msk [vmem:[#allocation3 + $0xf8] sm:$0xff] %vm1768, %v1767
        %p1801 = scmp.eq.s32.totalorder %s28, 1
        // Predicated region
        $region49: #{tpu_custom_call.1} parent=31 // pred_check
          %p1802 = pneg %p1801
        $region50: #{tpu_custom_call.1} parent=31 // pred_check_branch
          %1804 = sbr.rel (%p1802) target = $region52
        $region51: #{tpu_custom_call.1} parent=31 // pred_region
          %v1805 = vld [vmem:[#allocation3] sm:$0xff]
          %v1806 = vld [vmem:[#allocation3 + $0x8] sm:$0xff]
          %v1807 = vld [vmem:[#allocation3 + $0x10] sm:$0xff]
          %v1808 = vld [vmem:[#allocation3 + $0x18] sm:$0xff]
          %v1809 = vld [vmem:[#allocation3 + $0x20] sm:$0xff]
          %v1810 = vld [vmem:[#allocation3 + $0x28] sm:$0xff]
          %v1811 = vld [vmem:[#allocation3 + $0x30] sm:$0xff]
          %v1812 = vld [vmem:[#allocation3 + $0x38] sm:$0xff]
          %v1813 = vld [vmem:[#allocation3 + $0x40] sm:$0xff]
          %v1814 = vld [vmem:[#allocation3 + $0x48] sm:$0xff]
          %v1815 = vld [vmem:[#allocation3 + $0x50] sm:$0xff]
          %v1816 = vld [vmem:[#allocation3 + $0x58] sm:$0xff]
          %v1817 = vld [vmem:[#allocation3 + $0x60] sm:$0xff]
          %v1818 = vld [vmem:[#allocation3 + $0x68] sm:$0xff]
          %v1819 = vld [vmem:[#allocation3 + $0x70] sm:$0xff]
          %v1820 = vld [vmem:[#allocation3 + $0x78] sm:$0xff]
          %v1821 = vld [vmem:[#allocation3 + $0x80] sm:$0xff]
          %v1822 = vld [vmem:[#allocation3 + $0x88] sm:$0xff]
          %v1823 = vld [vmem:[#allocation3 + $0x90] sm:$0xff]
          %v1824 = vld [vmem:[#allocation3 + $0x98] sm:$0xff]
          %v1825 = vld [vmem:[#allocation3 + $0xa0] sm:$0xff]
          %v1826 = vld [vmem:[#allocation3 + $0xa8] sm:$0xff]
          %v1827 = vld [vmem:[#allocation3 + $0xb0] sm:$0xff]
          %v1828 = vld [vmem:[#allocation3 + $0xb8] sm:$0xff]
          %v1829 = vld [vmem:[#allocation3 + $0xc0] sm:$0xff]
          %v1830 = vld [vmem:[#allocation3 + $0xc8] sm:$0xff]
          %v1831 = vld [vmem:[#allocation3 + $0xd0] sm:$0xff]
          %v1832 = vld [vmem:[#allocation3 + $0xd8] sm:$0xff]
          %v1833 = vld [vmem:[#allocation3 + $0xe0] sm:$0xff]
          %v1834 = vld [vmem:[#allocation3 + $0xe8] sm:$0xff]
          %v1835 = vld [vmem:[#allocation3 + $0xf0] sm:$0xff]
          %v1836 = vld [vmem:[#allocation3 + $0xf8] sm:$0xff]
          %vm1837 = vcmp.gt.f32.partialorder %v1805, 0.5
          %vm1838 = vcmp.gt.f32.partialorder %v1806, 0.5
          %vm1839 = vcmp.gt.f32.partialorder %v1807, 0.5
          %vm1840 = vcmp.gt.f32.partialorder %v1808, 0.5
          %vm1841 = vcmp.gt.f32.partialorder %v1809, 0.5
          %vm1842 = vcmp.gt.f32.partialorder %v1810, 0.5
          %vm1843 = vcmp.gt.f32.partialorder %v1811, 0.5
          %vm1844 = vcmp.gt.f32.partialorder %v1812, 0.5
          %vm1845 = vcmp.gt.f32.partialorder %v1813, 0.5
          %vm1846 = vcmp.gt.f32.partialorder %v1814, 0.5
          %vm1847 = vcmp.gt.f32.partialorder %v1815, 0.5
          %vm1848 = vcmp.gt.f32.partialorder %v1816, 0.5
          %vm1849 = vcmp.gt.f32.partialorder %v1817, 0.5
          %vm1850 = vcmp.gt.f32.partialorder %v1818, 0.5
          %vm1851 = vcmp.gt.f32.partialorder %v1819, 0.5
          %vm1852 = vcmp.gt.f32.partialorder %v1820, 0.5
          %vm1853 = vcmp.gt.f32.partialorder %v1821, 0.5
          %vm1854 = vcmp.gt.f32.partialorder %v1822, 0.5
          %vm1855 = vcmp.gt.f32.partialorder %v1823, 0.5
          %vm1856 = vcmp.gt.f32.partialorder %v1824, 0.5
          %vm1857 = vcmp.gt.f32.partialorder %v1825, 0.5
          %vm1858 = vcmp.gt.f32.partialorder %v1826, 0.5
          %vm1859 = vcmp.gt.f32.partialorder %v1827, 0.5
          %vm1860 = vcmp.gt.f32.partialorder %v1828, 0.5
          %vm1861 = vcmp.gt.f32.partialorder %v1829, 0.5
          %vm1862 = vcmp.gt.f32.partialorder %v1830, 0.5
          %vm1863 = vcmp.gt.f32.partialorder %v1831, 0.5
          %vm1864 = vcmp.gt.f32.partialorder %v1832, 0.5
          %vm1865 = vcmp.gt.f32.partialorder %v1833, 0.5
          %vm1866 = vcmp.gt.f32.partialorder %v1834, 0.5
          %vm1867 = vcmp.gt.f32.partialorder %v1835, 0.5
          %vm1868 = vcmp.gt.f32.partialorder %v1836, 0.5
          %v1869 = vmax.f32 %v1805, 1.0
          %v1870 = vmax.f32 %v1806, 1.0
          %v1871 = vmax.f32 %v1807, 1.0
          %v1872 = vmax.f32 %v1808, 1.0
          %v1873 = vmax.f32 %v1809, 1.0
          %v1874 = vmax.f32 %v1810, 1.0
          %v1875 = vmax.f32 %v1811, 1.0
          %v1876 = vmax.f32 %v1812, 1.0
          %v1877 = vmax.f32 %v1813, 1.0
          %v1878 = vmax.f32 %v1814, 1.0
          %v1879 = vmax.f32 %v1815, 1.0
          %v1880 = vmax.f32 %v1816, 1.0
          %v1881 = vmax.f32 %v1817, 1.0
          %v1882 = vmax.f32 %v1818, 1.0
          %v1883 = vmax.f32 %v1819, 1.0
          %v1884 = vmax.f32 %v1820, 1.0
          %v1885 = vmax.f32 %v1821, 1.0
          %v1886 = vmax.f32 %v1822, 1.0
          %v1887 = vmax.f32 %v1823, 1.0
          %v1888 = vmax.f32 %v1824, 1.0
          %v1889 = vmax.f32 %v1825, 1.0
          %v1890 = vmax.f32 %v1826, 1.0
          %v1891 = vmax.f32 %v1827, 1.0
          %v1892 = vmax.f32 %v1828, 1.0
          %v1893 = vmax.f32 %v1829, 1.0
          %v1894 = vmax.f32 %v1830, 1.0
          %v1895 = vmax.f32 %v1831, 1.0
          %v1896 = vmax.f32 %v1832, 1.0
          %v1897 = vmax.f32 %v1833, 1.0
          %v1898 = vmax.f32 %v1834, 1.0
          %v1899 = vmax.f32 %v1835, 1.0
          %v1900 = vmax.f32 %v1836, 1.0
          %v1901 = vrcp.pop %v1869
          %v1902 = vmul.f32 1.0, %v1901
          %v1903 = vrcp.pop %v1870
          %v1904 = vmul.f32 1.0, %v1903
          %v1905 = vrcp.pop %v1871
          %v1906 = vmul.f32 1.0, %v1905
          %v1907 = vrcp.pop %v1872
          %v1908 = vmul.f32 1.0, %v1907
          %v1909 = vrcp.pop %v1873
          %v1910 = vmul.f32 1.0, %v1909
          %v1911 = vrcp.pop %v1874
          %v1912 = vmul.f32 1.0, %v1911
          %v1913 = vrcp.pop %v1875
          %v1914 = vmul.f32 1.0, %v1913
          %v1915 = vrcp.pop %v1876
          %v1916 = vmul.f32 1.0, %v1915
          %v1917 = vrcp.pop %v1877
          %v1918 = vmul.f32 1.0, %v1917
          %v1919 = vrcp.pop %v1878
          %v1920 = vmul.f32 1.0, %v1919
          %v1921 = vrcp.pop %v1879
          %v1922 = vmul.f32 1.0, %v1921
          %v1923 = vrcp.pop %v1880
          %v1924 = vmul.f32 1.0, %v1923
          %v1925 = vrcp.pop %v1881
          %v1926 = vmul.f32 1.0, %v1925
          %v1927 = vrcp.pop %v1882
          %v1928 = vmul.f32 1.0, %v1927
          %v1929 = vrcp.pop %v1883
          %v1930 = vmul.f32 1.0, %v1929
          %v1931 = vrcp.pop %v1884
          %v1932 = vmul.f32 1.0, %v1931
          %v1933 = vrcp.pop %v1885
          %v1934 = vmul.f32 1.0, %v1933
          %v1935 = vrcp.pop %v1886
          %v1936 = vmul.f32 1.0, %v1935
          %v1937 = vrcp.pop %v1887
          %v1938 = vmul.f32 1.0, %v1937
          %v1939 = vrcp.pop %v1888
          %v1940 = vmul.f32 1.0, %v1939
          %v1941 = vrcp.pop %v1889
          %v1942 = vmul.f32 1.0, %v1941
          %v1943 = vrcp.pop %v1890
          %v1944 = vmul.f32 1.0, %v1943
          %v1945 = vrcp.pop %v1891
          %v1946 = vmul.f32 1.0, %v1945
          %v1947 = vrcp.pop %v1892
          %v1948 = vmul.f32 1.0, %v1947
          %v1949 = vrcp.pop %v1893
          %v1950 = vmul.f32 1.0, %v1949
          %v1951 = vrcp.pop %v1894
          %v1952 = vmul.f32 1.0, %v1951
          %v1953 = vrcp.pop %v1895
          %v1954 = vmul.f32 1.0, %v1953
          %v1955 = vrcp.pop %v1896
          %v1956 = vmul.f32 1.0, %v1955
          %v1957 = vrcp.pop %v1897
          %v1958 = vmul.f32 1.0, %v1957
          %v1959 = vrcp.pop %v1898
          %v1960 = vmul.f32 1.0, %v1959
          %v1961 = vrcp.pop %v1899
          %v1962 = vmul.f32 1.0, %v1961
          %v1963 = vrcp.pop %v1900
          %v1964 = vmul.f32 1.0, %v1963
          %v1965 = vsel %vm1837, %v1902, 0.0
          %v1966 = vsel %vm1838, %v1904, 0.0
          %v1967 = vsel %vm1839, %v1906, 0.0
          %v1968 = vsel %vm1840, %v1908, 0.0
          %v1969 = vsel %vm1841, %v1910, 0.0
          %v1970 = vsel %vm1842, %v1912, 0.0
          %v1971 = vsel %vm1843, %v1914, 0.0
          %v1972 = vsel %vm1844, %v1916, 0.0
          %v1973 = vsel %vm1845, %v1918, 0.0
          %v1974 = vsel %vm1846, %v1920, 0.0
          %v1975 = vsel %vm1847, %v1922, 0.0
          %v1976 = vsel %vm1848, %v1924, 0.0
          %v1977 = vsel %vm1849, %v1926, 0.0
          %v1978 = vsel %vm1850, %v1928, 0.0
          %v1979 = vsel %vm1851, %v1930, 0.0
          %v1980 = vsel %vm1852, %v1932, 0.0
          %v1981 = vsel %vm1853, %v1934, 0.0
          %v1982 = vsel %vm1854, %v1936, 0.0
          %v1983 = vsel %vm1855, %v1938, 0.0
          %v1984 = vsel %vm1856, %v1940, 0.0
          %v1985 = vsel %vm1857, %v1942, 0.0
          %v1986 = vsel %vm1858, %v1944, 0.0
          %v1987 = vsel %vm1859, %v1946, 0.0
          %v1988 = vsel %vm1860, %v1948, 0.0
          %v1989 = vsel %vm1861, %v1950, 0.0
          %v1990 = vsel %vm1862, %v1952, 0.0
          %v1991 = vsel %vm1863, %v1954, 0.0
          %v1992 = vsel %vm1864, %v1956, 0.0
          %v1993 = vsel %vm1865, %v1958, 0.0
          %v1994 = vsel %vm1866, %v1960, 0.0
          %v1995 = vsel %vm1867, %v1962, 0.0
          %v1996 = vsel %vm1868, %v1964, 0.0
          %v1997 = vld [vmem:[#allocation2] sm:$0xff]
          %v1998 = vld [vmem:[#allocation2 + $0x8] sm:$0xff]
          %v1999 = vld [vmem:[#allocation2 + $0x10] sm:$0xff]
          %v2000 = vld [vmem:[#allocation2 + $0x18] sm:$0xff]
          %v2001 = vld [vmem:[#allocation2 + $0x20] sm:$0xff]
          %v2002 = vld [vmem:[#allocation2 + $0x28] sm:$0xff]
          %v2003 = vld [vmem:[#allocation2 + $0x30] sm:$0xff]
          %v2004 = vld [vmem:[#allocation2 + $0x38] sm:$0xff]
          %v2005 = vld [vmem:[#allocation2 + $0x40] sm:$0xff]
          %v2006 = vld [vmem:[#allocation2 + $0x48] sm:$0xff]
          %v2007 = vld [vmem:[#allocation2 + $0x50] sm:$0xff]
          %v2008 = vld [vmem:[#allocation2 + $0x58] sm:$0xff]
          %v2009 = vld [vmem:[#allocation2 + $0x60] sm:$0xff]
          %v2010 = vld [vmem:[#allocation2 + $0x68] sm:$0xff]
          %v2011 = vld [vmem:[#allocation2 + $0x70] sm:$0xff]
          %v2012 = vld [vmem:[#allocation2 + $0x78] sm:$0xff]
          %v2013 = vld [vmem:[#allocation2 + $0x80] sm:$0xff]
          %v2014 = vld [vmem:[#allocation2 + $0x88] sm:$0xff]
          %v2015 = vld [vmem:[#allocation2 + $0x90] sm:$0xff]
          %v2016 = vld [vmem:[#allocation2 + $0x98] sm:$0xff]
          %v2017 = vld [vmem:[#allocation2 + $0xa0] sm:$0xff]
          %v2018 = vld [vmem:[#allocation2 + $0xa8] sm:$0xff]
          %v2019 = vld [vmem:[#allocation2 + $0xb0] sm:$0xff]
          %v2020 = vld [vmem:[#allocation2 + $0xb8] sm:$0xff]
          %v2021 = vld [vmem:[#allocation2 + $0xc0] sm:$0xff]
          %v2022 = vld [vmem:[#allocation2 + $0xc8] sm:$0xff]
          %v2023 = vld [vmem:[#allocation2 + $0xd0] sm:$0xff]
          %v2024 = vld [vmem:[#allocation2 + $0xd8] sm:$0xff]
          %v2025 = vld [vmem:[#allocation2 + $0xe0] sm:$0xff]
          %v2026 = vld [vmem:[#allocation2 + $0xe8] sm:$0xff]
          %v2027 = vld [vmem:[#allocation2 + $0xf0] sm:$0xff]
          %v2028 = vld [vmem:[#allocation2 + $0xf8] sm:$0xff]
          %2030 = vset.pattern.permute.xlu0 0
          %2031 = vperm.xlu0 %2030, %v1965
          %v2032 = vpop.permute.xlu0 %2031
          %2035 = vset.pattern.permute.xlu0 0
          %2036 = vperm.xlu0 %2035, %v1966
          %v2037 = vpop.permute.xlu0 %2036
          %2040 = vset.pattern.permute.xlu0 0
          %2041 = vperm.xlu0 %2040, %v1967
          %v2042 = vpop.permute.xlu0 %2041
          %2045 = vset.pattern.permute.xlu0 0
          %2046 = vperm.xlu0 %2045, %v1968
          %v2047 = vpop.permute.xlu0 %2046
          %2050 = vset.pattern.permute.xlu0 0
          %2051 = vperm.xlu0 %2050, %v1969
          %v2052 = vpop.permute.xlu0 %2051
          %2055 = vset.pattern.permute.xlu0 0
          %2056 = vperm.xlu0 %2055, %v1970
          %v2057 = vpop.permute.xlu0 %2056
          %2060 = vset.pattern.permute.xlu0 0
          %2061 = vperm.xlu0 %2060, %v1971
          %v2062 = vpop.permute.xlu0 %2061
          %2065 = vset.pattern.permute.xlu0 0
          %2066 = vperm.xlu0 %2065, %v1972
          %v2067 = vpop.permute.xlu0 %2066
          %2070 = vset.pattern.permute.xlu0 0
          %2071 = vperm.xlu0 %2070, %v1973
          %v2072 = vpop.permute.xlu0 %2071
          %2075 = vset.pattern.permute.xlu0 0
          %2076 = vperm.xlu0 %2075, %v1974
          %v2077 = vpop.permute.xlu0 %2076
          %2080 = vset.pattern.permute.xlu0 0
          %2081 = vperm.xlu0 %2080, %v1975
          %v2082 = vpop.permute.xlu0 %2081
          %2085 = vset.pattern.permute.xlu0 0
          %2086 = vperm.xlu0 %2085, %v1976
          %v2087 = vpop.permute.xlu0 %2086
          %2090 = vset.pattern.permute.xlu0 0
          %2091 = vperm.xlu0 %2090, %v1977
          %v2092 = vpop.permute.xlu0 %2091
          %2095 = vset.pattern.permute.xlu0 0
          %2096 = vperm.xlu0 %2095, %v1978
          %v2097 = vpop.permute.xlu0 %2096
          %2100 = vset.pattern.permute.xlu0 0
          %2101 = vperm.xlu0 %2100, %v1979
          %v2102 = vpop.permute.xlu0 %2101
          %2105 = vset.pattern.permute.xlu0 0
          %2106 = vperm.xlu0 %2105, %v1980
          %v2107 = vpop.permute.xlu0 %2106
          %2110 = vset.pattern.permute.xlu0 0
          %2111 = vperm.xlu0 %2110, %v1981
          %v2112 = vpop.permute.xlu0 %2111
          %2115 = vset.pattern.permute.xlu0 0
          %2116 = vperm.xlu0 %2115, %v1982
          %v2117 = vpop.permute.xlu0 %2116
          %2120 = vset.pattern.permute.xlu0 0
          %2121 = vperm.xlu0 %2120, %v1983
          %v2122 = vpop.permute.xlu0 %2121
          %2125 = vset.pattern.permute.xlu0 0
          %2126 = vperm.xlu0 %2125, %v1984
          %v2127 = vpop.permute.xlu0 %2126
          %2130 = vset.pattern.permute.xlu0 0
          %2131 = vperm.xlu0 %2130, %v1985
          %v2132 = vpop.permute.xlu0 %2131
          %2135 = vset.pattern.permute.xlu0 0
          %2136 = vperm.xlu0 %2135, %v1986
          %v2137 = vpop.permute.xlu0 %2136
          %2140 = vset.pattern.permute.xlu0 0
          %2141 = vperm.xlu0 %2140, %v1987
          %v2142 = vpop.permute.xlu0 %2141
          %2145 = vset.pattern.permute.xlu0 0
          %2146 = vperm.xlu0 %2145, %v1988
          %v2147 = vpop.permute.xlu0 %2146
          %2150 = vset.pattern.permute.xlu0 0
          %2151 = vperm.xlu0 %2150, %v1989
          %v2152 = vpop.permute.xlu0 %2151
          %2155 = vset.pattern.permute.xlu0 0
          %2156 = vperm.xlu0 %2155, %v1990
          %v2157 = vpop.permute.xlu0 %2156
          %2160 = vset.pattern.permute.xlu0 0
          %2161 = vperm.xlu0 %2160, %v1991
          %v2162 = vpop.permute.xlu0 %2161
          %2165 = vset.pattern.permute.xlu0 0
          %2166 = vperm.xlu0 %2165, %v1992
          %v2167 = vpop.permute.xlu0 %2166
          %2170 = vset.pattern.permute.xlu0 0
          %2171 = vperm.xlu0 %2170, %v1993
          %v2172 = vpop.permute.xlu0 %2171
          %2175 = vset.pattern.permute.xlu0 0
          %2176 = vperm.xlu0 %2175, %v1994
          %v2177 = vpop.permute.xlu0 %2176
          %2180 = vset.pattern.permute.xlu0 0
          %2181 = vperm.xlu0 %2180, %v1995
          %v2182 = vpop.permute.xlu0 %2181
          %2185 = vset.pattern.permute.xlu0 0
          %2186 = vperm.xlu0 %2185, %v1996
          %v2187 = vpop.permute.xlu0 %2186
          %v2189 = vmul.f32 %v1997, %v2032
          %v2190 = vmul.f32 %v1998, %v2037
          %v2191 = vmul.f32 %v1999, %v2042
          %v2192 = vmul.f32 %v2000, %v2047
          %v2193 = vmul.f32 %v2001, %v2052
          %v2194 = vmul.f32 %v2002, %v2057
          %v2195 = vmul.f32 %v2003, %v2062
          %v2196 = vmul.f32 %v2004, %v2067
          %v2197 = vmul.f32 %v2005, %v2072
          %v2198 = vmul.f32 %v2006, %v2077
          %v2199 = vmul.f32 %v2007, %v2082
          %v2200 = vmul.f32 %v2008, %v2087
          %v2201 = vmul.f32 %v2009, %v2092
          %v2202 = vmul.f32 %v2010, %v2097
          %v2203 = vmul.f32 %v2011, %v2102
          %v2204 = vmul.f32 %v2012, %v2107
          %v2205 = vmul.f32 %v2013, %v2112
          %v2206 = vmul.f32 %v2014, %v2117
          %v2207 = vmul.f32 %v2015, %v2122
          %v2208 = vmul.f32 %v2016, %v2127
          %v2209 = vmul.f32 %v2017, %v2132
          %v2210 = vmul.f32 %v2018, %v2137
          %v2211 = vmul.f32 %v2019, %v2142
          %v2212 = vmul.f32 %v2020, %v2147
          %v2213 = vmul.f32 %v2021, %v2152
          %v2214 = vmul.f32 %v2022, %v2157
          %v2215 = vmul.f32 %v2023, %v2162
          %v2216 = vmul.f32 %v2024, %v2167
          %v2217 = vmul.f32 %v2025, %v2172
          %v2218 = vmul.f32 %v2026, %v2177
          %v2219 = vmul.f32 %v2027, %v2182
          %v2220 = vmul.f32 %v2028, %v2187
          %v2221 = vld [vmem:[%s250] sm:$0xff]
          %v2222 = vld [vmem:[%s250 + $0x8] sm:$0xff]
          %v2223 = vld [vmem:[%s250 + $0x10] sm:$0xff]
          %v2224 = vld [vmem:[%s250 + $0x18] sm:$0xff]
          %v2225 = vld [vmem:[%s250 + $0x20] sm:$0xff]
          %v2226 = vld [vmem:[%s250 + $0x28] sm:$0xff]
          %v2227 = vld [vmem:[%s250 + $0x30] sm:$0xff]
          %v2228 = vld [vmem:[%s250 + $0x38] sm:$0xff]
          %v2229 = vld [vmem:[%s250 + $0x40] sm:$0xff]
          %v2230 = vld [vmem:[%s250 + $0x48] sm:$0xff]
          %v2231 = vld [vmem:[%s250 + $0x50] sm:$0xff]
          %v2232 = vld [vmem:[%s250 + $0x58] sm:$0xff]
          %v2233 = vld [vmem:[%s250 + $0x60] sm:$0xff]
          %v2234 = vld [vmem:[%s250 + $0x68] sm:$0xff]
          %v2235 = vld [vmem:[%s250 + $0x70] sm:$0xff]
          %v2236 = vld [vmem:[%s250 + $0x78] sm:$0xff]
          %v2237 = vld [vmem:[%s250 + $0x80] sm:$0xff]
          %v2238 = vld [vmem:[%s250 + $0x88] sm:$0xff]
          %v2239 = vld [vmem:[%s250 + $0x90] sm:$0xff]
          %v2240 = vld [vmem:[%s250 + $0x98] sm:$0xff]
          %v2241 = vld [vmem:[%s250 + $0xa0] sm:$0xff]
          %v2242 = vld [vmem:[%s250 + $0xa8] sm:$0xff]
          %v2243 = vld [vmem:[%s250 + $0xb0] sm:$0xff]
          %v2244 = vld [vmem:[%s250 + $0xb8] sm:$0xff]
          %v2245 = vld [vmem:[%s250 + $0xc0] sm:$0xff]
          %v2246 = vld [vmem:[%s250 + $0xc8] sm:$0xff]
          %v2247 = vld [vmem:[%s250 + $0xd0] sm:$0xff]
          %v2248 = vld [vmem:[%s250 + $0xd8] sm:$0xff]
          %v2249 = vld [vmem:[%s250 + $0xe0] sm:$0xff]
          %v2250 = vld [vmem:[%s250 + $0xe8] sm:$0xff]
          %v2251 = vld [vmem:[%s250 + $0xf0] sm:$0xff]
          %v2252 = vld [vmem:[%s250 + $0xf8] sm:$0xff]
          %v2253 = vadd.f32 %v2189, %v2221
          %v2254 = vadd.f32 %v2190, %v2222
          %v2255 = vadd.f32 %v2191, %v2223
          %v2256 = vadd.f32 %v2192, %v2224
          %v2257 = vadd.f32 %v2193, %v2225
          %v2258 = vadd.f32 %v2194, %v2226
          %v2259 = vadd.f32 %v2195, %v2227
          %v2260 = vadd.f32 %v2196, %v2228
          %v2261 = vadd.f32 %v2197, %v2229
          %v2262 = vadd.f32 %v2198, %v2230
          %v2263 = vadd.f32 %v2199, %v2231
          %v2264 = vadd.f32 %v2200, %v2232
          %v2265 = vadd.f32 %v2201, %v2233
          %v2266 = vadd.f32 %v2202, %v2234
          %v2267 = vadd.f32 %v2203, %v2235
          %v2268 = vadd.f32 %v2204, %v2236
          %v2269 = vadd.f32 %v2205, %v2237
          %v2270 = vadd.f32 %v2206, %v2238
          %v2271 = vadd.f32 %v2207, %v2239
          %v2272 = vadd.f32 %v2208, %v2240
          %v2273 = vadd.f32 %v2209, %v2241
          %v2274 = vadd.f32 %v2210, %v2242
          %v2275 = vadd.f32 %v2211, %v2243
          %v2276 = vadd.f32 %v2212, %v2244
          %v2277 = vadd.f32 %v2213, %v2245
          %v2278 = vadd.f32 %v2214, %v2246
          %v2279 = vadd.f32 %v2215, %v2247
          %v2280 = vadd.f32 %v2216, %v2248
          %v2281 = vadd.f32 %v2217, %v2249
          %v2282 = vadd.f32 %v2218, %v2250
          %v2283 = vadd.f32 %v2219, %v2251
          %v2284 = vadd.f32 %v2220, %v2252
          %v2285 = vmax.f32 %v2253, 0.0
          %v2286 = vmax.f32 %v2254, 0.0
          %v2287 = vmax.f32 %v2255, 0.0
          %v2288 = vmax.f32 %v2256, 0.0
          %v2289 = vmax.f32 %v2257, 0.0
          %v2290 = vmax.f32 %v2258, 0.0
          %v2291 = vmax.f32 %v2259, 0.0
          %v2292 = vmax.f32 %v2260, 0.0
          %v2293 = vmax.f32 %v2261, 0.0
          %v2294 = vmax.f32 %v2262, 0.0
          %v2295 = vmax.f32 %v2263, 0.0
          %v2296 = vmax.f32 %v2264, 0.0
          %v2297 = vmax.f32 %v2265, 0.0
          %v2298 = vmax.f32 %v2266, 0.0
          %v2299 = vmax.f32 %v2267, 0.0
          %v2300 = vmax.f32 %v2268, 0.0
          %v2301 = vmax.f32 %v2269, 0.0
          %v2302 = vmax.f32 %v2270, 0.0
          %v2303 = vmax.f32 %v2271, 0.0
          %v2304 = vmax.f32 %v2272, 0.0
          %v2305 = vmax.f32 %v2273, 0.0
          %v2306 = vmax.f32 %v2274, 0.0
          %v2307 = vmax.f32 %v2275, 0.0
          %v2308 = vmax.f32 %v2276, 0.0
          %v2309 = vmax.f32 %v2277, 0.0
          %v2310 = vmax.f32 %v2278, 0.0
          %v2311 = vmax.f32 %v2279, 0.0
          %v2312 = vmax.f32 %v2280, 0.0
          %v2313 = vmax.f32 %v2281, 0.0
          %v2314 = vmax.f32 %v2282, 0.0
          %v2315 = vmax.f32 %v2283, 0.0
          %v2316 = vmax.f32 %v2284, 0.0
          %2317 = vst [vmem:[%s282] sm:$0xff] %v2285
          %2318 = vst [vmem:[%s282 + $0x8] sm:$0xff] %v2286
          %2319 = vst [vmem:[%s282 + $0x10] sm:$0xff] %v2287
          %2320 = vst [vmem:[%s282 + $0x18] sm:$0xff] %v2288
          %2321 = vst [vmem:[%s282 + $0x20] sm:$0xff] %v2289
          %2322 = vst [vmem:[%s282 + $0x28] sm:$0xff] %v2290
          %2323 = vst [vmem:[%s282 + $0x30] sm:$0xff] %v2291
          %2324 = vst [vmem:[%s282 + $0x38] sm:$0xff] %v2292
          %2325 = vst [vmem:[%s282 + $0x40] sm:$0xff] %v2293
          %2326 = vst [vmem:[%s282 + $0x48] sm:$0xff] %v2294
          %2327 = vst [vmem:[%s282 + $0x50] sm:$0xff] %v2295
          %2328 = vst [vmem:[%s282 + $0x58] sm:$0xff] %v2296
          %2329 = vst [vmem:[%s282 + $0x60] sm:$0xff] %v2297
          %2330 = vst [vmem:[%s282 + $0x68] sm:$0xff] %v2298
          %2331 = vst [vmem:[%s282 + $0x70] sm:$0xff] %v2299
          %2332 = vst [vmem:[%s282 + $0x78] sm:$0xff] %v2300
          %2333 = vst [vmem:[%s282 + $0x80] sm:$0xff] %v2301
          %2334 = vst [vmem:[%s282 + $0x88] sm:$0xff] %v2302
          %2335 = vst [vmem:[%s282 + $0x90] sm:$0xff] %v2303
          %2336 = vst [vmem:[%s282 + $0x98] sm:$0xff] %v2304
          %2337 = vst [vmem:[%s282 + $0xa0] sm:$0xff] %v2305
          %2338 = vst [vmem:[%s282 + $0xa8] sm:$0xff] %v2306
          %2339 = vst [vmem:[%s282 + $0xb0] sm:$0xff] %v2307
          %2340 = vst [vmem:[%s282 + $0xb8] sm:$0xff] %v2308
          %2341 = vst [vmem:[%s282 + $0xc0] sm:$0xff] %v2309
          %2342 = vst [vmem:[%s282 + $0xc8] sm:$0xff] %v2310
          %2343 = vst [vmem:[%s282 + $0xd0] sm:$0xff] %v2311
          %2344 = vst [vmem:[%s282 + $0xd8] sm:$0xff] %v2312
          %2345 = vst [vmem:[%s282 + $0xe0] sm:$0xff] %v2313
          %2346 = vst [vmem:[%s282 + $0xe8] sm:$0xff] %v2314
          %2347 = vst [vmem:[%s282 + $0xf0] sm:$0xff] %v2315
          %2348 = vst [vmem:[%s282 + $0xf8] sm:$0xff] %v2316
        $region52: #{tpu_custom_call.1} parent=31 // pred_fallthru
          _
        %s2349 = sand.u32 %s123, 1
        %s2350 = scalar_lea.sflag [#allocation6], %s2349
        %s2351 = sand.u32 %s123, 1
        %s2352 = smul.addr %s2351, 256
        %s2353 = scalar_lea.vmem [#allocation10], %s2352
        // Predicated region
        $region53: #{tpu_custom_call.1} parent=31 // pred_check
          %p2354 = pneg %p133
        $region54: #{tpu_custom_call.1} parent=31 // pred_check_branch
          %2356 = sbr.rel (%p2354) target = $region56
        $region55: #{tpu_custom_call.1} parent=31 // pred_region
          %s2357 = smul.u32 32, %s27
          %s2359 = ssub.s32 4096, 4096
          %2360 = vsyncadd %s2350, %s2359
          %s2361 = smul.addr %s2357, 128
          %s2362 = scalar_lea.hbm %s3, %s2361
          %s2363 = sshll.u32 %s2353, 4
          %s2364 = int_to_ptr.vmem [resolvable:$true] %s2363
          %2369 = dma.vmem_to_hbm [thread:$0]  %s2364, 4096, %s2362, %s2350, 128, 128, 8
        $region56: #{tpu_custom_call.1} parent=31 // pred_fallthru
          _
      $region32: #{tpu_custom_call.1} parent=5 // pred_fallthru
        _
      %p2370 = scmp.le.s32.totalorder 2, %s18
      // Predicated region
      $region57: #{tpu_custom_call.1} parent=5 // pred_check
        %p2371 = pneg %p2370
      $region58: #{tpu_custom_call.1} parent=5 // pred_check_branch
        %2373 = sbr.rel (%p2371) target = $region60
      $region59: #{tpu_custom_call.1} parent=5 // pred_region
        %s2374 = ssub.s32 %s18, 2
        // Predicated region
        $region61: #{tpu_custom_call.1} parent=59 // pred_check
          %p2375 = pneg %p139
        $region62: #{tpu_custom_call.1} parent=59 // pred_check_branch
          %2377 = sbr.rel (%p2375) target = $region64
        $region63: #{tpu_custom_call.1} parent=59 // pred_region
          %s2378 = sand.u32 %s124, 1
          %s2379 = scalar_lea.sflag [#allocation6], %s2378
          %s2380 = sand.u32 %s124, 1
          %s2381 = smul.addr %s2380, 256
          %s2382 = scalar_lea.vmem [#allocation10], %s2381
          %2383 = dma.done %s2379, 4096
        $region64: #{tpu_custom_call.1} parent=59 // pred_fallthru
          _
      $region60: #{tpu_custom_call.1} parent=5 // pred_fallthru
        _
    $region6: #{tpu_custom_call.1} parent=1 // loop_footer
      %s22 = sadd.s32 1, %s18
    $region7: #{tpu_custom_call.1} parent=1 // loop_footer_branch
      %17 = sbr.rel target = $region3
    $region8: #{tpu_custom_call.1} parent=1 // loop_exit
      _
    %2384 = vsyncpa [#allocation5], 1
    %s2385 = scalar_lea.sflag [#allocation5], 1
    %2386 = vsyncpa %s2385, 1
    %2387 = vsyncpa [#allocation8], 1
    %s2388 = scalar_lea.sflag [#allocation8], 1
    %2389 = vsyncpa %s2388, 1
    %2390 = vsyncpa [#allocation6], 1
    %s2391 = scalar_lea.sflag [#allocation6], 1
    %2392 = vsyncpa %s2391, 1

</llo_original>
